<compile_context>
chip_gen: v5e
topology: v5e:2x2
jax: 0.10.0
libtpu: 0.0.40
codegen_flags: <defaults>
</compile_context>

<pallas_src>
import math
import jax
import jax.numpy as jnp
from jax.experimental import pallas as pl
from jax.experimental.pallas import tpu as pltpu

_EPS = 1e-5
_INV_SQRT2 = 1.0 / math.sqrt(2.0)


def _resblock_kernel(x_ref, g_ref, beta_ref, w1_ref, b1_ref, w2_ref, b2_ref, o_ref):
    # Load the (TM, C) tile of tokens; all elementwise math in fp32.
    x = x_ref[...].astype(jnp.float32)

    # --- LayerNorm over channels (last dim), biased variance like nn.LayerNorm ---
    mean = jnp.mean(x, axis=-1, keepdims=True)
    centered = x - mean
    var = jnp.mean(centered * centered, axis=-1, keepdims=True)
    xn = centered * jax.lax.rsqrt(var + _EPS)
    xn = xn * g_ref[...] + beta_ref[...]          # (TM, C) * (1, C) + (1, C)

    # --- proj: Linear -> GELU(exact) -> Linear ---
    # MXU matmuls take bf16 operands (weight refs are already bf16), fp32 accum.
    h = jnp.dot(xn.astype(jnp.bfloat16), w1_ref[...],
                preferred_element_type=jnp.float32) + b1_ref[...]
    # exact (erf) GELU on the fp32 intermediate: erf lowers to the EUP slot.
    h = 0.5 * h * (1.0 + jax.lax.erf(h * _INV_SQRT2))
    y = jnp.dot(h.astype(jnp.bfloat16), w2_ref[...],
                preferred_element_type=jnp.float32) + b2_ref[...]

    # --- residual (residual is the *normalized* x, per the PyTorch code) ---
    o_ref[...] = (xn + y).astype(o_ref.dtype)


def _device_kind():
    try:
        return jax.devices()[0].device_kind.lower()
    except Exception:
        return ""


def _default_block_rows():
    # v5e MXU is 128-wide (128-row tiles saturate it); v6e/v7x MXUs are 256-wide.
    return 128 if "v5" in _device_kind() else 256


def _vmem_limit_bytes(channels, block_rows):
    # v7x has 64 MiB physical VMEM per TC; v5e/v6e have 128 MiB.
    cap = (56 << 20) if "7" in _device_kind() else (100 << 20)
    weights = 2 * 2 * channels * channels * 2            # 2 weights, 2 pipeline bufs, bf16
    tiles = 2 * 2 * block_rows * channels * 4            # in + out token tiles, fp32, 2 bufs
    vectors = 4 * 2 * channels * 4                       # gamma/beta/b1/b2
    budget = weights + tiles + vectors + (8 << 20)       # headroom for compiler scratch
    return max(32 << 20, min(budget, cap))


def simple_res_block(x, params, *, block_rows=None):
    """x: (..., C) array; params: dict with ln_g, ln_b, w1, b1, w2, b2."""
    orig_shape = x.shape
    C = orig_shape[-1]
    x2d = x.reshape(-1, C)
    T = x2d.shape[0]

    if block_rows is None:
        block_rows = _default_block_rows()

    # Pad the token count up to a multiple of the tile; padded rows are sliced off.
    Tp = block_rows * pl.cdiv(T, block_rows)
    if Tp != T:
        x2d = jnp.pad(x2d, ((0, Tp - T), (0, 0)))

    ln_g = params["ln_g"].reshape(1, C).astype(jnp.float32)
    ln_b = params["ln_b"].reshape(1, C).astype(jnp.float32)
    # PyTorch Linear computes x @ W.T + b; weights are stored pre-transposed as
    # (C_in, C_out) and cast to bf16 for the MXU (fp32 accumulation in-kernel).
    w1 = params["w1"].astype(jnp.bfloat16)
    b1 = params["b1"].reshape(1, C).astype(jnp.float32)
    w2 = params["w2"].astype(jnp.bfloat16)
    b2 = params["b2"].reshape(1, C).astype(jnp.float32)

    grid = (Tp // block_rows,)

    out = pl.pallas_call(
        _resblock_kernel,
        out_shape=jax.ShapeDtypeStruct((Tp, C), x2d.dtype),
        grid_spec=pltpu.PrefetchScalarGridSpec(
            num_scalar_prefetch=0,
            grid=grid,
            in_specs=[
                pl.BlockSpec((block_rows, C), lambda i: (i, 0)),   # x tile
                pl.BlockSpec((1, C), lambda i: (0, 0)),            # ln gamma
                pl.BlockSpec((1, C), lambda i: (0, 0)),            # ln beta
                pl.BlockSpec((C, C), lambda i: (0, 0)),            # W1 (resident, bf16)
                pl.BlockSpec((1, C), lambda i: (0, 0)),            # b1
                pl.BlockSpec((C, C), lambda i: (0, 0)),            # W2 (resident, bf16)
                pl.BlockSpec((1, C), lambda i: (0, 0)),            # b2
            ],
            out_specs=pl.BlockSpec((block_rows, C), lambda i: (i, 0)),
        ),
        compiler_params=pltpu.CompilerParams(
            dimension_semantics=("parallel",),          # megacore-shards tokens on v7x
            vmem_limit_bytes=_vmem_limit_bytes(C, block_rows),
        ),
    )(x2d, ln_g, ln_b, w1, b1, w2, b2)

    if Tp != T:
        out = out[:T]
    return out.reshape(orig_shape)


def init_params(channels, key):
    """Deterministic synthetic init matching nn.LayerNorm / nn.Linear shapes."""
    k1, k2, k3, k4 = jax.random.split(key, 4)
    bound = 1.0 / math.sqrt(channels)
    return {
        "ln_g": jnp.ones((channels,), jnp.float32),
        "ln_b": jnp.zeros((channels,), jnp.float32),
        # Stored as (C_in, C_out) == W.T of the PyTorch (out, in) weight.
        "w1": jax.random.uniform(k1, (channels, channels), jnp.float32, -bound, bound),
        "b1": jax.random.uniform(k2, (channels,), jnp.float32, -bound, bound),
        "w2": jax.random.uniform(k3, (channels, channels), jnp.float32, -bound, bound),
        "b2": jax.random.uniform(k4, (channels,), jnp.float32, -bound, bound),
    }


def _reference(x, p):
    """Pure-JAX fp32 reference of the PyTorch forward, for a sanity check."""
    mean = jnp.mean(x, axis=-1, keepdims=True)
    var = jnp.mean((x - mean) ** 2, axis=-1, keepdims=True)
    xn = (x - mean) / jnp.sqrt(var + _EPS) * p["ln_g"] + p["ln_b"]
    h = xn @ p["w1"] + p["b1"]
    h = 0.5 * h * (1.0 + jax.lax.erf(h * _INV_SQRT2))
    y = h @ p["w2"] + p["b2"]
    return xn + y


if __name__ == "__main__":
    # NOTE: these small shapes are a correctness check only; for perf
    # measurements use C a multiple of 128 (e.g. 1024/4096) and T >= 1024.
    key = jax.random.PRNGKey(0)
    kx, kp = jax.random.split(key)

    B, S, C = 2, 8, 32           # batch=2, seq=8, channels=32
    x = jax.random.normal(kx, (B, S, C), jnp.float32)
    params = init_params(C, kp)

    out = jax.block_until_ready(simple_res_block(x, params))

    ref = _reference(x, params)
    assert out.shape == (B, S, C)
    # bf16 MXU operands (fp32 accumulation) -> loosened tolerance vs fp32 reference.
    assert jnp.allclose(out, ref, atol=2e-2, rtol=2e-2), "mismatch vs reference"

    print("KERNEL_OK")
</pallas_src>

<mosaic_0001>
module attributes {stable_mosaic.version = 11 : i64} {
  func.func @_resblock_kernel(%arg0: i32, %arg1: memref<256x32xf32, #tpu.memory_space<vmem>>, %arg2: memref<1x32xf32, #tpu.memory_space<vmem>>, %arg3: memref<1x32xf32, #tpu.memory_space<vmem>>, %arg4: memref<32x32xbf16, #tpu.memory_space<vmem>>, %arg5: memref<1x32xf32, #tpu.memory_space<vmem>>, %arg6: memref<32x32xbf16, #tpu.memory_space<vmem>>, %arg7: memref<1x32xf32, #tpu.memory_space<vmem>>, %arg8: memref<256x32xf32, #tpu.memory_space<vmem>>) attributes {dimension_semantics = [#tpu.dimension_semantics<parallel>], iteration_bounds = array<i64: 1>, scalar_prefetch = 0 : i64, scratch_operands = 0 : i64, tpu.core_type = #tpu.core_type<tc>, window_params = [{transform_indices = @transform_0, window_bounds = array<i64: 256, 32>}, {pipeline_mode = #tpu.pipeline_mode<synchronous>, transform_indices = @transform_1, window_bounds = array<i64: 1, 32>}, {pipeline_mode = #tpu.pipeline_mode<synchronous>, transform_indices = @transform_2, window_bounds = array<i64: 1, 32>}, {pipeline_mode = #tpu.pipeline_mode<synchronous>, transform_indices = @transform_3, window_bounds = array<i64: 32, 32>}, {pipeline_mode = #tpu.pipeline_mode<synchronous>, transform_indices = @transform_4, window_bounds = array<i64: 1, 32>}, {pipeline_mode = #tpu.pipeline_mode<synchronous>, transform_indices = @transform_5, window_bounds = array<i64: 32, 32>}, {pipeline_mode = #tpu.pipeline_mode<synchronous>, transform_indices = @transform_6, window_bounds = array<i64: 1, 32>}, {transform_indices = @transform_7, window_bounds = array<i64: 256, 32>}]} {
    %c0 = arith.constant 0 : index
    %c0_0 = arith.constant 0 : index
    %0 = vector.load %arg1[%c0, %c0_0] : memref<256x32xf32, #tpu.memory_space<vmem>>, vector<256x32xf32>
    %cst = arith.constant dense<0.000000e+00> : vector<256xf32>
    %1 = vector.multi_reduction <add>, %0, %cst [1] : vector<256x32xf32> to vector<256xf32>
    %2 = vector.shape_cast %1 : vector<256xf32> to vector<256x1xf32>
    %cst_1 = arith.constant 3.200000e+01 : f32
    %3 = vector.broadcast %cst_1 : f32 to vector<256x1xf32>
    %4 = arith.divf %2, %3 : vector<256x1xf32>
    %5 = vector.broadcast %4 : vector<256x1xf32> to vector<256x32xf32>
    %6 = arith.subf %0, %5 : vector<256x32xf32>
    %7 = arith.mulf %6, %6 : vector<256x32xf32>
    %cst_2 = arith.constant dense<0.000000e+00> : vector<256xf32>
    %8 = vector.multi_reduction <add>, %7, %cst_2 [1] : vector<256x32xf32> to vector<256xf32>
    %9 = vector.shape_cast %8 : vector<256xf32> to vector<256x1xf32>
    %cst_3 = arith.constant 3.200000e+01 : f32
    %10 = vector.broadcast %cst_3 : f32 to vector<256x1xf32>
    %11 = arith.divf %9, %10 : vector<256x1xf32>
    %cst_4 = arith.constant 9.99999974E-6 : f32
    %12 = vector.broadcast %cst_4 : f32 to vector<256x1xf32>
    %13 = arith.addf %11, %12 : vector<256x1xf32>
    %14 = math.rsqrt %13 : vector<256x1xf32>
    %15 = vector.broadcast %14 : vector<256x1xf32> to vector<256x32xf32>
    %16 = arith.mulf %6, %15 : vector<256x32xf32>
    %c0_5 = arith.constant 0 : index
    %c0_6 = arith.constant 0 : index
    %17 = vector.load %arg2[%c0_5, %c0_6] : memref<1x32xf32, #tpu.memory_space<vmem>>, vector<1x32xf32>
    %18 = vector.broadcast %17 : vector<1x32xf32> to vector<256x32xf32>
    %19 = arith.mulf %16, %18 : vector<256x32xf32>
    %c0_7 = arith.constant 0 : index
    %c0_8 = arith.constant 0 : index
    %20 = vector.load %arg3[%c0_7, %c0_8] : memref<1x32xf32, #tpu.memory_space<vmem>>, vector<1x32xf32>
    %21 = vector.broadcast %20 : vector<1x32xf32> to vector<256x32xf32>
    %22 = arith.addf %19, %21 : vector<256x32xf32>
    %23 = arith.truncf %22 : vector<256x32xf32> to vector<256x32xbf16>
    %c0_9 = arith.constant 0 : index
    %c0_10 = arith.constant 0 : index
    %24 = vector.load %arg4[%c0_9, %c0_10] : memref<32x32xbf16, #tpu.memory_space<vmem>>, vector<32x32xbf16>
    %cst_11 = arith.constant dense<0.000000e+00> : vector<256x32xf32>
    %25 = tpu.matmul %23, %24, %cst_11 {dimension_numbers = #tpu.dot_dimension_numbers<[1], [0], [0], [1], [0, 0, 1, 1], [], []>} : vector<256x32xbf16>, vector<32x32xbf16>, vector<256x32xf32> -> vector<256x32xf32>
    %c0_12 = arith.constant 0 : index
    %c0_13 = arith.constant 0 : index
    %26 = vector.load %arg5[%c0_12, %c0_13] : memref<1x32xf32, #tpu.memory_space<vmem>>, vector<1x32xf32>
    %27 = vector.broadcast %26 : vector<1x32xf32> to vector<256x32xf32>
    %28 = arith.addf %25, %27 : vector<256x32xf32>
    %cst_14 = arith.constant 5.000000e-01 : f32
    %29 = vector.broadcast %cst_14 : f32 to vector<256x32xf32>
    %30 = arith.mulf %29, %28 : vector<256x32xf32>
    %cst_15 = arith.constant 0.707106769 : f32
    %31 = vector.broadcast %cst_15 : f32 to vector<256x32xf32>
    %32 = arith.mulf %28, %31 : vector<256x32xf32>
    %33 = math.erf %32 : vector<256x32xf32>
    %cst_16 = arith.constant 1.000000e+00 : f32
    %34 = vector.broadcast %cst_16 : f32 to vector<256x32xf32>
    %35 = arith.addf %34, %33 : vector<256x32xf32>
    %36 = arith.mulf %30, %35 : vector<256x32xf32>
    %37 = arith.truncf %36 : vector<256x32xf32> to vector<256x32xbf16>
    %c0_17 = arith.constant 0 : index
    %c0_18 = arith.constant 0 : index
    %38 = vector.load %arg6[%c0_17, %c0_18] : memref<32x32xbf16, #tpu.memory_space<vmem>>, vector<32x32xbf16>
    %cst_19 = arith.constant dense<0.000000e+00> : vector<256x32xf32>
    %39 = tpu.matmul %37, %38, %cst_19 {dimension_numbers = #tpu.dot_dimension_numbers<[1], [0], [0], [1], [0, 0, 1, 1], [], []>} : vector<256x32xbf16>, vector<32x32xbf16>, vector<256x32xf32> -> vector<256x32xf32>
    %c0_20 = arith.constant 0 : index
    %c0_21 = arith.constant 0 : index
    %40 = vector.load %arg7[%c0_20, %c0_21] : memref<1x32xf32, #tpu.memory_space<vmem>>, vector<1x32xf32>
    %41 = vector.broadcast %40 : vector<1x32xf32> to vector<256x32xf32>
    %42 = arith.addf %39, %41 : vector<256x32xf32>
    %43 = arith.addf %22, %42 : vector<256x32xf32>
    %c0_22 = arith.constant 0 : index
    %c0_23 = arith.constant 0 : index
    %44 = vector.load %arg8[%c0_22, %c0_23] : memref<256x32xf32, #tpu.memory_space<vmem>>, vector<256x32xf32>
    tpu.vector_store %arg8[%c0_22, %c0_23], %43 {strides = array<i32>} : memref<256x32xf32, #tpu.memory_space<vmem>>, vector<256x32xf32>,
    return
  }
  func.func @transform_0(%arg0: i32) -> (i32, i32) {
    %c0_i32 = arith.constant 0 : i32
    %c0_i32_0 = arith.constant 0 : i32
    return %arg0, %c0_i32 : i32, i32
  }
  func.func @transform_1(%arg0: i32) -> (i32, i32) {
    %c0_i32 = arith.constant 0 : i32
    %c0_i32_0 = arith.constant 0 : i32
    %c0_i32_1 = arith.constant 0 : i32
    return %c0_i32, %c0_i32_0 : i32, i32
  }
  func.func @transform_2(%arg0: i32) -> (i32, i32) {
    %c0_i32 = arith.constant 0 : i32
    %c0_i32_0 = arith.constant 0 : i32
    %c0_i32_1 = arith.constant 0 : i32
    return %c0_i32, %c0_i32_0 : i32, i32
  }
  func.func @transform_3(%arg0: i32) -> (i32, i32) {
    %c0_i32 = arith.constant 0 : i32
    %c0_i32_0 = arith.constant 0 : i32
    %c0_i32_1 = arith.constant 0 : i32
    return %c0_i32, %c0_i32_0 : i32, i32
  }
  func.func @transform_4(%arg0: i32) -> (i32, i32) {
    %c0_i32 = arith.constant 0 : i32
    %c0_i32_0 = arith.constant 0 : i32
    %c0_i32_1 = arith.constant 0 : i32
    return %c0_i32, %c0_i32_0 : i32, i32
  }
  func.func @transform_5(%arg0: i32) -> (i32, i32) {
    %c0_i32 = arith.constant 0 : i32
    %c0_i32_0 = arith.constant 0 : i32
    %c0_i32_1 = arith.constant 0 : i32
    return %c0_i32, %c0_i32_0 : i32, i32
  }
  func.func @transform_6(%arg0: i32) -> (i32, i32) {
    %c0_i32 = arith.constant 0 : i32
    %c0_i32_0 = arith.constant 0 : i32
    %c0_i32_1 = arith.constant 0 : i32
    return %c0_i32, %c0_i32_0 : i32, i32
  }
  func.func @transform_7(%arg0: i32) -> (i32, i32) {
    %c0_i32 = arith.constant 0 : i32
    %c0_i32_0 = arith.constant 0 : i32
    return %arg0, %c0_i32 : i32, i32
  }
}

</mosaic_0001>

<llo_original>
// kernel: tpu_custom_call.1
$region0: #{tpu_custom_call.1}
  #allocation0 [shape = 'u32[]', space=smem, size = 0x4, offset = 0x4, fixed_abs, tag = 'smem constant byte address 0x4 - core index']
  #allocation1 [shape = 'u32[72,128]{1,0:T(1,128)}', space=vmem, size = 0x9000, scoped, tag = 'internal scratch']
  %s0 = inlined_call_operand.vmem [shape: f32[256,32], index: 0, kind: input, shape index: {}]
  %s1 = inlined_call_operand.vmem [shape: f32[1,32], index: 1, kind: input, shape index: {}]
  %s2 = inlined_call_operand.vmem [shape: f32[1,32], index: 2, kind: input, shape index: {}]
  %s3 = inlined_call_operand.vmem [shape: bf16[32,32], index: 3, kind: input, shape index: {}]
  %s4 = inlined_call_operand.vmem [shape: f32[1,32], index: 4, kind: input, shape index: {}]
  %s5 = inlined_call_operand.vmem [shape: bf16[32,32], index: 5, kind: input, shape index: {}]
  %s6 = inlined_call_operand.vmem [shape: f32[1,32], index: 6, kind: input, shape index: {}]
  %s7 = inlined_call_operand.vmem [shape: f32[256,32], index: 7, kind: output, shape index: {}]
  %s8 = sld [smem:[#allocation0]]
  $region38: #{tpu_custom_call.1} parent=0
    _
  %s10 = ssub.s32 1, %s8
  %s11 = scalar_select 0, %s10, %s8
  // Predicated region
  $region2: #{tpu_custom_call.1} parent=0 // pred_check
    _
  $region3: #{tpu_custom_call.1} parent=0 // pred_check_branch
    %13 = sbr.rel (0) target = $region5
  $region4: #{tpu_custom_call.1} parent=0 // pred_region
    _
  $region5: #{tpu_custom_call.1} parent=0 // pred_fallthru
    _
  // Predicated region
  $region6: #{tpu_custom_call.1} parent=0 // pred_check
    _
  $region7: #{tpu_custom_call.1} parent=0 // pred_check_branch
    %15 = sbr.rel (0) target = $region9
  $region8: #{tpu_custom_call.1} parent=0 // pred_region
    _
  $region9: #{tpu_custom_call.1} parent=0 // pred_fallthru
    _
  // Predicated region
  $region10: #{tpu_custom_call.1} parent=0 // pred_check
    _
  $region11: #{tpu_custom_call.1} parent=0 // pred_check_branch
    %17 = sbr.rel (0) target = $region13
  $region12: #{tpu_custom_call.1} parent=0 // pred_region
    _
  $region13: #{tpu_custom_call.1} parent=0 // pred_fallthru
    _
  // Predicated region
  $region14: #{tpu_custom_call.1} parent=0 // pred_check
    _
  $region15: #{tpu_custom_call.1} parent=0 // pred_check_branch
    %19 = sbr.rel (0) target = $region17
  $region16: #{tpu_custom_call.1} parent=0 // pred_region
    _
  $region17: #{tpu_custom_call.1} parent=0 // pred_fallthru
    _
  // Predicated region
  $region18: #{tpu_custom_call.1} parent=0 // pred_check
    _
  $region19: #{tpu_custom_call.1} parent=0 // pred_check_branch
    %21 = sbr.rel (0) target = $region21
  $region20: #{tpu_custom_call.1} parent=0 // pred_region
    _
  $region21: #{tpu_custom_call.1} parent=0 // pred_fallthru
    _
  // Predicated region
  $region22: #{tpu_custom_call.1} parent=0 // pred_check
    _
  $region23: #{tpu_custom_call.1} parent=0 // pred_check_branch
    %23 = sbr.rel (0) target = $region25
  $region24: #{tpu_custom_call.1} parent=0 // pred_region
    _
  $region25: #{tpu_custom_call.1} parent=0 // pred_fallthru
    _
  // Predicated region
  $region26: #{tpu_custom_call.1} parent=0 // pred_check
    _
  $region27: #{tpu_custom_call.1} parent=0 // pred_check_branch
    %25 = sbr.rel (0) target = $region29
  $region28: #{tpu_custom_call.1} parent=0 // pred_region
    _
  $region29: #{tpu_custom_call.1} parent=0 // pred_fallthru
    _
  %v27 = vld [vmem:[%s0] sm:$0xff]
  %v28 = vld [vmem:[%s0 + $0x8] sm:$0xff]
  %v29 = vld [vmem:[%s0 + $0x10] sm:$0xff]
  %v30 = vld [vmem:[%s0 + $0x18] sm:$0xff]
  %v31 = vld [vmem:[%s0 + $0x20] sm:$0xff]
  %v32 = vld [vmem:[%s0 + $0x28] sm:$0xff]
  %v33 = vld [vmem:[%s0 + $0x30] sm:$0xff]
  %v34 = vld [vmem:[%s0 + $0x38] sm:$0xff]
  %v35 = vld [vmem:[%s0 + $0x40] sm:$0xff]
  %v36 = vld [vmem:[%s0 + $0x48] sm:$0xff]
  %v37 = vld [vmem:[%s0 + $0x50] sm:$0xff]
  %v38 = vld [vmem:[%s0 + $0x58] sm:$0xff]
  %v39 = vld [vmem:[%s0 + $0x60] sm:$0xff]
  %v40 = vld [vmem:[%s0 + $0x68] sm:$0xff]
  %v41 = vld [vmem:[%s0 + $0x70] sm:$0xff]
  %v42 = vld [vmem:[%s0 + $0x78] sm:$0xff]
  %v43 = vld [vmem:[%s0 + $0x80] sm:$0xff]
  %v44 = vld [vmem:[%s0 + $0x88] sm:$0xff]
  %v45 = vld [vmem:[%s0 + $0x90] sm:$0xff]
  %v46 = vld [vmem:[%s0 + $0x98] sm:$0xff]
  %v47 = vld [vmem:[%s0 + $0xa0] sm:$0xff]
  %v48 = vld [vmem:[%s0 + $0xa8] sm:$0xff]
  %v49 = vld [vmem:[%s0 + $0xb0] sm:$0xff]
  %v50 = vld [vmem:[%s0 + $0xb8] sm:$0xff]
  %v51 = vld [vmem:[%s0 + $0xc0] sm:$0xff]
  %v52 = vld [vmem:[%s0 + $0xc8] sm:$0xff]
  %v53 = vld [vmem:[%s0 + $0xd0] sm:$0xff]
  %v54 = vld [vmem:[%s0 + $0xd8] sm:$0xff]
  %v55 = vld [vmem:[%s0 + $0xe0] sm:$0xff]
  %v56 = vld [vmem:[%s0 + $0xe8] sm:$0xff]
  %v57 = vld [vmem:[%s0 + $0xf0] sm:$0xff]
  %v58 = vld [vmem:[%s0 + $0xf8] sm:$0xff]
  %vm59 = vcmask 261120
  %v60 = vsel %vm59, %v27, 0.0
  %61 = vadd.xlane.f32.xlu0 %v60
  %v62 = vpop.xlane.xlu0 %61
  %v63 = vsel %vm59, %v28, 0.0
  %64 = vadd.xlane.f32.xlu0 %v63
  %v65 = vpop.xlane.xlu0 %64
  %v66 = vsel %vm59, %v29, 0.0
  %67 = vadd.xlane.f32.xlu0 %v66
  %v68 = vpop.xlane.xlu0 %67
  %v69 = vsel %vm59, %v30, 0.0
  %70 = vadd.xlane.f32.xlu0 %v69
  %v71 = vpop.xlane.xlu0 %70
  %v72 = vsel %vm59, %v31, 0.0
  %73 = vadd.xlane.f32.xlu0 %v72
  %v74 = vpop.xlane.xlu0 %73
  %v75 = vsel %vm59, %v32, 0.0
  %76 = vadd.xlane.f32.xlu0 %v75
  %v77 = vpop.xlane.xlu0 %76
  %v78 = vsel %vm59, %v33, 0.0
  %79 = vadd.xlane.f32.xlu0 %v78
  %v80 = vpop.xlane.xlu0 %79
  %v81 = vsel %vm59, %v34, 0.0
  %82 = vadd.xlane.f32.xlu0 %v81
  %v83 = vpop.xlane.xlu0 %82
  %v84 = vsel %vm59, %v35, 0.0
  %85 = vadd.xlane.f32.xlu0 %v84
  %v86 = vpop.xlane.xlu0 %85
  %v87 = vsel %vm59, %v36, 0.0
  %88 = vadd.xlane.f32.xlu0 %v87
  %v89 = vpop.xlane.xlu0 %88
  %v90 = vsel %vm59, %v37, 0.0
  %91 = vadd.xlane.f32.xlu0 %v90
  %v92 = vpop.xlane.xlu0 %91
  %v93 = vsel %vm59, %v38, 0.0
  %94 = vadd.xlane.f32.xlu0 %v93
  %v95 = vpop.xlane.xlu0 %94
  %v96 = vsel %vm59, %v39, 0.0
  %97 = vadd.xlane.f32.xlu0 %v96
  %v98 = vpop.xlane.xlu0 %97
  %v99 = vsel %vm59, %v40, 0.0
  %100 = vadd.xlane.f32.xlu0 %v99
  %v101 = vpop.xlane.xlu0 %100
  %v102 = vsel %vm59, %v41, 0.0
  %103 = vadd.xlane.f32.xlu0 %v102
  %v104 = vpop.xlane.xlu0 %103
  %v105 = vsel %vm59, %v42, 0.0
  %106 = vadd.xlane.f32.xlu0 %v105
  %v107 = vpop.xlane.xlu0 %106
  %v108 = vsel %vm59, %v43, 0.0
  %109 = vadd.xlane.f32.xlu0 %v108
  %v110 = vpop.xlane.xlu0 %109
  %v111 = vsel %vm59, %v44, 0.0
  %112 = vadd.xlane.f32.xlu0 %v111
  %v113 = vpop.xlane.xlu0 %112
  %v114 = vsel %vm59, %v45, 0.0
  %115 = vadd.xlane.f32.xlu0 %v114
  %v116 = vpop.xlane.xlu0 %115
  %v117 = vsel %vm59, %v46, 0.0
  %118 = vadd.xlane.f32.xlu0 %v117
  %v119 = vpop.xlane.xlu0 %118
  %v120 = vsel %vm59, %v47, 0.0
  %121 = vadd.xlane.f32.xlu0 %v120
  %v122 = vpop.xlane.xlu0 %121
  %v123 = vsel %vm59, %v48, 0.0
  %124 = vadd.xlane.f32.xlu0 %v123
  %v125 = vpop.xlane.xlu0 %124
  %v126 = vsel %vm59, %v49, 0.0
  %127 = vadd.xlane.f32.xlu0 %v126
  %v128 = vpop.xlane.xlu0 %127
  %v129 = vsel %vm59, %v50, 0.0
  %130 = vadd.xlane.f32.xlu0 %v129
  %v131 = vpop.xlane.xlu0 %130
  %v132 = vsel %vm59, %v51, 0.0
  %133 = vadd.xlane.f32.xlu0 %v132
  %v134 = vpop.xlane.xlu0 %133
  %v135 = vsel %vm59, %v52, 0.0
  %136 = vadd.xlane.f32.xlu0 %v135
  %v137 = vpop.xlane.xlu0 %136
  %v138 = vsel %vm59, %v53, 0.0
  %139 = vadd.xlane.f32.xlu0 %v138
  %v140 = vpop.xlane.xlu0 %139
  %v141 = vsel %vm59, %v54, 0.0
  %142 = vadd.xlane.f32.xlu0 %v141
  %v143 = vpop.xlane.xlu0 %142
  %v144 = vsel %vm59, %v55, 0.0
  %145 = vadd.xlane.f32.xlu0 %v144
  %v146 = vpop.xlane.xlu0 %145
  %v147 = vsel %vm59, %v56, 0.0
  %148 = vadd.xlane.f32.xlu0 %v147
  %v149 = vpop.xlane.xlu0 %148
  %v150 = vsel %vm59, %v57, 0.0
  %151 = vadd.xlane.f32.xlu0 %v150
  %v152 = vpop.xlane.xlu0 %151
  %v153 = vsel %vm59, %v58, 0.0
  %154 = vadd.xlane.f32.xlu0 %v153
  %v155 = vpop.xlane.xlu0 %154
  %v156 = vrcp.pop 32.0
  %v157 = vmul.f32 32.0, %v156
  %v158 = vsub.f32 1.0, %v157
  %v159 = vmul.f32 %v156, %v158
  %v160 = vadd.f32 %v156, %v159
  %vm161 = vweird.f32 %v156
  %v162 = vsel %vm161, %v156, %v160
  %v163 = vmul.f32 %v62, %v162
  %v164 = vmul.f32 %v65, %v162
  %v165 = vmul.f32 %v68, %v162
  %v166 = vmul.f32 %v71, %v162
  %v167 = vmul.f32 %v74, %v162
  %v168 = vmul.f32 %v77, %v162
  %v169 = vmul.f32 %v80, %v162
  %v170 = vmul.f32 %v83, %v162
  %v171 = vmul.f32 %v86, %v162
  %v172 = vmul.f32 %v89, %v162
  %v173 = vmul.f32 %v92, %v162
  %v174 = vmul.f32 %v95, %v162
  %v175 = vmul.f32 %v98, %v162
  %v176 = vmul.f32 %v101, %v162
  %v177 = vmul.f32 %v104, %v162
  %v178 = vmul.f32 %v107, %v162
  %v179 = vmul.f32 %v110, %v162
  %v180 = vmul.f32 %v113, %v162
  %v181 = vmul.f32 %v116, %v162
  %v182 = vmul.f32 %v119, %v162
  %v183 = vmul.f32 %v122, %v162
  %v184 = vmul.f32 %v125, %v162
  %v185 = vmul.f32 %v128, %v162
  %v186 = vmul.f32 %v131, %v162
  %v187 = vmul.f32 %v134, %v162
  %v188 = vmul.f32 %v137, %v162
  %v189 = vmul.f32 %v140, %v162
  %v190 = vmul.f32 %v143, %v162
  %v191 = vmul.f32 %v146, %v162
  %v192 = vmul.f32 %v149, %v162
  %v193 = vmul.f32 %v152, %v162
  %v194 = vmul.f32 %v155, %v162
  %v195 = vsub.f32 %v27, %v163
  %v196 = vsub.f32 %v28, %v164
  %v197 = vsub.f32 %v29, %v165
  %v198 = vsub.f32 %v30, %v166
  %v199 = vsub.f32 %v31, %v167
  %v200 = vsub.f32 %v32, %v168
  %v201 = vsub.f32 %v33, %v169
  %v202 = vsub.f32 %v34, %v170
  %v203 = vsub.f32 %v35, %v171
  %v204 = vsub.f32 %v36, %v172
  %v205 = vsub.f32 %v37, %v173
  %v206 = vsub.f32 %v38, %v174
  %v207 = vsub.f32 %v39, %v175
  %v208 = vsub.f32 %v40, %v176
  %v209 = vsub.f32 %v41, %v177
  %v210 = vsub.f32 %v42, %v178
  %v211 = vsub.f32 %v43, %v179
  %v212 = vsub.f32 %v44, %v180
  %v213 = vsub.f32 %v45, %v181
  %v214 = vsub.f32 %v46, %v182
  %v215 = vsub.f32 %v47, %v183
  %v216 = vsub.f32 %v48, %v184
  %v217 = vsub.f32 %v49, %v185
  %v218 = vsub.f32 %v50, %v186
  %v219 = vsub.f32 %v51, %v187
  %v220 = vsub.f32 %v52, %v188
  %v221 = vsub.f32 %v53, %v189
  %v222 = vsub.f32 %v54, %v190
  %v223 = vsub.f32 %v55, %v191
  %v224 = vsub.f32 %v56, %v192
  %v225 = vsub.f32 %v57, %v193
  %v226 = vsub.f32 %v58, %v194
  %v227 = vmul.f32 %v195, %v195
  %v228 = vmul.f32 %v196, %v196
  %v229 = vmul.f32 %v197, %v197
  %v230 = vmul.f32 %v198, %v198
  %v231 = vmul.f32 %v199, %v199
  %v232 = vmul.f32 %v200, %v200
  %v233 = vmul.f32 %v201, %v201
  %v234 = vmul.f32 %v202, %v202
  %v235 = vmul.f32 %v203, %v203
  %v236 = vmul.f32 %v204, %v204
  %v237 = vmul.f32 %v205, %v205
  %v238 = vmul.f32 %v206, %v206
  %v239 = vmul.f32 %v207, %v207
  %v240 = vmul.f32 %v208, %v208
  %v241 = vmul.f32 %v209, %v209
  %v242 = vmul.f32 %v210, %v210
  %v243 = vmul.f32 %v211, %v211
  %v244 = vmul.f32 %v212, %v212
  %v245 = vmul.f32 %v213, %v213
  %v246 = vmul.f32 %v214, %v214
  %v247 = vmul.f32 %v215, %v215
  %v248 = vmul.f32 %v216, %v216
  %v249 = vmul.f32 %v217, %v217
  %v250 = vmul.f32 %v218, %v218
  %v251 = vmul.f32 %v219, %v219
  %v252 = vmul.f32 %v220, %v220
  %v253 = vmul.f32 %v221, %v221
  %v254 = vmul.f32 %v222, %v222
  %v255 = vmul.f32 %v223, %v223
  %v256 = vmul.f32 %v224, %v224
  %v257 = vmul.f32 %v225, %v225
  %v258 = vmul.f32 %v226, %v226
  %v259 = vsel %vm59, %v227, 0.0
  %260 = vadd.xlane.f32.xlu0 %v259
  %v261 = vpop.xlane.xlu0 %260
  %v262 = vsel %vm59, %v228, 0.0
  %263 = vadd.xlane.f32.xlu0 %v262
  %v264 = vpop.xlane.xlu0 %263
  %v265 = vsel %vm59, %v229, 0.0
  %266 = vadd.xlane.f32.xlu0 %v265
  %v267 = vpop.xlane.xlu0 %266
  %v268 = vsel %vm59, %v230, 0.0
  %269 = vadd.xlane.f32.xlu0 %v268
  %v270 = vpop.xlane.xlu0 %269
  %v271 = vsel %vm59, %v231, 0.0
  %272 = vadd.xlane.f32.xlu0 %v271
  %v273 = vpop.xlane.xlu0 %272
  %v274 = vsel %vm59, %v232, 0.0
  %275 = vadd.xlane.f32.xlu0 %v274
  %v276 = vpop.xlane.xlu0 %275
  %v277 = vsel %vm59, %v233, 0.0
  %278 = vadd.xlane.f32.xlu0 %v277
  %v279 = vpop.xlane.xlu0 %278
  %v280 = vsel %vm59, %v234, 0.0
  %281 = vadd.xlane.f32.xlu0 %v280
  %v282 = vpop.xlane.xlu0 %281
  %v283 = vsel %vm59, %v235, 0.0
  %284 = vadd.xlane.f32.xlu0 %v283
  %v285 = vpop.xlane.xlu0 %284
  %v286 = vsel %vm59, %v236, 0.0
  %287 = vadd.xlane.f32.xlu0 %v286
  %v288 = vpop.xlane.xlu0 %287
  %v289 = vsel %vm59, %v237, 0.0
  %290 = vadd.xlane.f32.xlu0 %v289
  %v291 = vpop.xlane.xlu0 %290
  %v292 = vsel %vm59, %v238, 0.0
  %293 = vadd.xlane.f32.xlu0 %v292
  %v294 = vpop.xlane.xlu0 %293
  %v295 = vsel %vm59, %v239, 0.0
  %296 = vadd.xlane.f32.xlu0 %v295
  %v297 = vpop.xlane.xlu0 %296
  %v298 = vsel %vm59, %v240, 0.0
  %299 = vadd.xlane.f32.xlu0 %v298
  %v300 = vpop.xlane.xlu0 %299
  %v301 = vsel %vm59, %v241, 0.0
  %302 = vadd.xlane.f32.xlu0 %v301
  %v303 = vpop.xlane.xlu0 %302
  %v304 = vsel %vm59, %v242, 0.0
  %305 = vadd.xlane.f32.xlu0 %v304
  %v306 = vpop.xlane.xlu0 %305
  %v307 = vsel %vm59, %v243, 0.0
  %308 = vadd.xlane.f32.xlu0 %v307
  %v309 = vpop.xlane.xlu0 %308
  %v310 = vsel %vm59, %v244, 0.0
  %311 = vadd.xlane.f32.xlu0 %v310
  %v312 = vpop.xlane.xlu0 %311
  %v313 = vsel %vm59, %v245, 0.0
  %314 = vadd.xlane.f32.xlu0 %v313
  %v315 = vpop.xlane.xlu0 %314
  %v316 = vsel %vm59, %v246, 0.0
  %317 = vadd.xlane.f32.xlu0 %v316
  %v318 = vpop.xlane.xlu0 %317
  %v319 = vsel %vm59, %v247, 0.0
  %320 = vadd.xlane.f32.xlu0 %v319
  %v321 = vpop.xlane.xlu0 %320
  %v322 = vsel %vm59, %v248, 0.0
  %323 = vadd.xlane.f32.xlu0 %v322
  %v324 = vpop.xlane.xlu0 %323
  %v325 = vsel %vm59, %v249, 0.0
  %326 = vadd.xlane.f32.xlu0 %v325
  %v327 = vpop.xlane.xlu0 %326
  %v328 = vsel %vm59, %v250, 0.0
  %329 = vadd.xlane.f32.xlu0 %v328
  %v330 = vpop.xlane.xlu0 %329
  %v331 = vsel %vm59, %v251, 0.0
  %332 = vadd.xlane.f32.xlu0 %v331
  %v333 = vpop.xlane.xlu0 %332
  %v334 = vsel %vm59, %v252, 0.0
  %335 = vadd.xlane.f32.xlu0 %v334
  %v336 = vpop.xlane.xlu0 %335
  %v337 = vsel %vm59, %v253, 0.0
  %338 = vadd.xlane.f32.xlu0 %v337
  %v339 = vpop.xlane.xlu0 %338
  %v340 = vsel %vm59, %v254, 0.0
  %341 = vadd.xlane.f32.xlu0 %v340
  %v342 = vpop.xlane.xlu0 %341
  %v343 = vsel %vm59, %v255, 0.0
  %344 = vadd.xlane.f32.xlu0 %v343
  %v345 = vpop.xlane.xlu0 %344
  %v346 = vsel %vm59, %v256, 0.0
  %347 = vadd.xlane.f32.xlu0 %v346
  %v348 = vpop.xlane.xlu0 %347
  %v349 = vsel %vm59, %v257, 0.0
  %350 = vadd.xlane.f32.xlu0 %v349
  %v351 = vpop.xlane.xlu0 %350
  %v352 = vsel %vm59, %v258, 0.0
  %353 = vadd.xlane.f32.xlu0 %v352
  %v354 = vpop.xlane.xlu0 %353
  %v355 = vmul.f32 %v261, %v162
  %v356 = vmul.f32 %v264, %v162
  %v357 = vmul.f32 %v267, %v162
  %v358 = vmul.f32 %v270, %v162
  %v359 = vmul.f32 %v273, %v162
  %v360 = vmul.f32 %v276, %v162
  %v361 = vmul.f32 %v279, %v162
  %v362 = vmul.f32 %v282, %v162
  %v363 = vmul.f32 %v285, %v162
  %v364 = vmul.f32 %v288, %v162
  %v365 = vmul.f32 %v291, %v162
  %v366 = vmul.f32 %v294, %v162
  %v367 = vmul.f32 %v297, %v162
  %v368 = vmul.f32 %v300, %v162
  %v369 = vmul.f32 %v303, %v162
  %v370 = vmul.f32 %v306, %v162
  %v371 = vmul.f32 %v309, %v162
  %v372 = vmul.f32 %v312, %v162
  %v373 = vmul.f32 %v315, %v162
  %v374 = vmul.f32 %v318, %v162
  %v375 = vmul.f32 %v321, %v162
  %v376 = vmul.f32 %v324, %v162
  %v377 = vmul.f32 %v327, %v162
  %v378 = vmul.f32 %v330, %v162
  %v379 = vmul.f32 %v333, %v162
  %v380 = vmul.f32 %v336, %v162
  %v381 = vmul.f32 %v339, %v162
  %v382 = vmul.f32 %v342, %v162
  %v383 = vmul.f32 %v345, %v162
  %v384 = vmul.f32 %v348, %v162
  %v385 = vmul.f32 %v351, %v162
  %v386 = vmul.f32 %v354, %v162
  %v387 = vadd.f32 %v355, 1e-05
  %v388 = vadd.f32 %v356, 1e-05
  %v389 = vadd.f32 %v357, 1e-05
  %v390 = vadd.f32 %v358, 1e-05
  %v391 = vadd.f32 %v359, 1e-05
  %v392 = vadd.f32 %v360, 1e-05
  %v393 = vadd.f32 %v361, 1e-05
  %v394 = vadd.f32 %v362, 1e-05
  %v395 = vadd.f32 %v363, 1e-05
  %v396 = vadd.f32 %v364, 1e-05
  %v397 = vadd.f32 %v365, 1e-05
  %v398 = vadd.f32 %v366, 1e-05
  %v399 = vadd.f32 %v367, 1e-05
  %v400 = vadd.f32 %v368, 1e-05
  %v401 = vadd.f32 %v369, 1e-05
  %v402 = vadd.f32 %v370, 1e-05
  %v403 = vadd.f32 %v371, 1e-05
  %v404 = vadd.f32 %v372, 1e-05
  %v405 = vadd.f32 %v373, 1e-05
  %v406 = vadd.f32 %v374, 1e-05
  %v407 = vadd.f32 %v375, 1e-05
  %v408 = vadd.f32 %v376, 1e-05
  %v409 = vadd.f32 %v377, 1e-05
  %v410 = vadd.f32 %v378, 1e-05
  %v411 = vadd.f32 %v379, 1e-05
  %v412 = vadd.f32 %v380, 1e-05
  %v413 = vadd.f32 %v381, 1e-05
  %v414 = vadd.f32 %v382, 1e-05
  %v415 = vadd.f32 %v383, 1e-05
  %v416 = vadd.f32 %v384, 1e-05
  %v417 = vadd.f32 %v385, 1e-05
  %v418 = vadd.f32 %v386, 1e-05
  %v419 = vrsqrt.pop %v387
  %v420 = vmul.f32 %v419, %v387
  %v421 = vmul.f32 %v420, %v419
  %v422 = vmul.f32 0.5, %v421
  %v423 = vsub.f32 1.5, %v422
  %v424 = vmul.f32 %v419, %v423
  %vm425 = vweird.f32 %v387
  %vm426 = vweird.f32 %v419
  %vm427 = vmor %vm425, %vm426
  %v428 = vsel %vm427, %v419, %v424
  %v429 = vrsqrt.pop %v388
  %v430 = vmul.f32 %v429, %v388
  %v431 = vmul.f32 %v430, %v429
  %v432 = vmul.f32 0.5, %v431
  %v433 = vsub.f32 1.5, %v432
  %v434 = vmul.f32 %v429, %v433
  %vm435 = vweird.f32 %v388
  %vm436 = vweird.f32 %v429
  %vm437 = vmor %vm435, %vm436
  %v438 = vsel %vm437, %v429, %v434
  %v439 = vrsqrt.pop %v389
  %v440 = vmul.f32 %v439, %v389
  %v441 = vmul.f32 %v440, %v439
  %v442 = vmul.f32 0.5, %v441
  %v443 = vsub.f32 1.5, %v442
  %v444 = vmul.f32 %v439, %v443
  %vm445 = vweird.f32 %v389
  %vm446 = vweird.f32 %v439
  %vm447 = vmor %vm445, %vm446
  %v448 = vsel %vm447, %v439, %v444
  %v449 = vrsqrt.pop %v390
  %v450 = vmul.f32 %v449, %v390
  %v451 = vmul.f32 %v450, %v449
  %v452 = vmul.f32 0.5, %v451
  %v453 = vsub.f32 1.5, %v452
  %v454 = vmul.f32 %v449, %v453
  %vm455 = vweird.f32 %v390
  %vm456 = vweird.f32 %v449
  %vm457 = vmor %vm455, %vm456
  %v458 = vsel %vm457, %v449, %v454
  %v459 = vrsqrt.pop %v391
  %v460 = vmul.f32 %v459, %v391
  %v461 = vmul.f32 %v460, %v459
  %v462 = vmul.f32 0.5, %v461
  %v463 = vsub.f32 1.5, %v462
  %v464 = vmul.f32 %v459, %v463
  %vm465 = vweird.f32 %v391
  %vm466 = vweird.f32 %v459
  %vm467 = vmor %vm465, %vm466
  %v468 = vsel %vm467, %v459, %v464
  %v469 = vrsqrt.pop %v392
  %v470 = vmul.f32 %v469, %v392
  %v471 = vmul.f32 %v470, %v469
  %v472 = vmul.f32 0.5, %v471
  %v473 = vsub.f32 1.5, %v472
  %v474 = vmul.f32 %v469, %v473
  %vm475 = vweird.f32 %v392
  %vm476 = vweird.f32 %v469
  %vm477 = vmor %vm475, %vm476
  %v478 = vsel %vm477, %v469, %v474
  %v479 = vrsqrt.pop %v393
  %v480 = vmul.f32 %v479, %v393
  %v481 = vmul.f32 %v480, %v479
  %v482 = vmul.f32 0.5, %v481
  %v483 = vsub.f32 1.5, %v482
  %v484 = vmul.f32 %v479, %v483
  %vm485 = vweird.f32 %v393
  %vm486 = vweird.f32 %v479
  %vm487 = vmor %vm485, %vm486
  %v488 = vsel %vm487, %v479, %v484
  %v489 = vrsqrt.pop %v394
  %v490 = vmul.f32 %v489, %v394
  %v491 = vmul.f32 %v490, %v489
  %v492 = vmul.f32 0.5, %v491
  %v493 = vsub.f32 1.5, %v492
  %v494 = vmul.f32 %v489, %v493
  %vm495 = vweird.f32 %v394
  %vm496 = vweird.f32 %v489
  %vm497 = vmor %vm495, %vm496
  %v498 = vsel %vm497, %v489, %v494
  %v499 = vrsqrt.pop %v395
  %v500 = vmul.f32 %v499, %v395
  %v501 = vmul.f32 %v500, %v499
  %v502 = vmul.f32 0.5, %v501
  %v503 = vsub.f32 1.5, %v502
  %v504 = vmul.f32 %v499, %v503
  %vm505 = vweird.f32 %v395
  %vm506 = vweird.f32 %v499
  %vm507 = vmor %vm505, %vm506
  %v508 = vsel %vm507, %v499, %v504
  %v509 = vrsqrt.pop %v396
  %v510 = vmul.f32 %v509, %v396
  %v511 = vmul.f32 %v510, %v509
  %v512 = vmul.f32 0.5, %v511
  %v513 = vsub.f32 1.5, %v512
  %v514 = vmul.f32 %v509, %v513
  %vm515 = vweird.f32 %v396
  %vm516 = vweird.f32 %v509
  %vm517 = vmor %vm515, %vm516
  %v518 = vsel %vm517, %v509, %v514
  %v519 = vrsqrt.pop %v397
  %v520 = vmul.f32 %v519, %v397
  %v521 = vmul.f32 %v520, %v519
  %v522 = vmul.f32 0.5, %v521
  %v523 = vsub.f32 1.5, %v522
  %v524 = vmul.f32 %v519, %v523
  %vm525 = vweird.f32 %v397
  %vm526 = vweird.f32 %v519
  %vm527 = vmor %vm525, %vm526
  %v528 = vsel %vm527, %v519, %v524
  %v529 = vrsqrt.pop %v398
  %v530 = vmul.f32 %v529, %v398
  %v531 = vmul.f32 %v530, %v529
  %v532 = vmul.f32 0.5, %v531
  %v533 = vsub.f32 1.5, %v532
  %v534 = vmul.f32 %v529, %v533
  %vm535 = vweird.f32 %v398
  %vm536 = vweird.f32 %v529
  %vm537 = vmor %vm535, %vm536
  %v538 = vsel %vm537, %v529, %v534
  %v539 = vrsqrt.pop %v399
  %v540 = vmul.f32 %v539, %v399
  %v541 = vmul.f32 %v540, %v539
  %v542 = vmul.f32 0.5, %v541
  %v543 = vsub.f32 1.5, %v542
  %v544 = vmul.f32 %v539, %v543
  %vm545 = vweird.f32 %v399
  %vm546 = vweird.f32 %v539
  %vm547 = vmor %vm545, %vm546
  %v548 = vsel %vm547, %v539, %v544
  %v549 = vrsqrt.pop %v400
  %v550 = vmul.f32 %v549, %v400
  %v551 = vmul.f32 %v550, %v549
  %v552 = vmul.f32 0.5, %v551
  %v553 = vsub.f32 1.5, %v552
  %v554 = vmul.f32 %v549, %v553
  %vm555 = vweird.f32 %v400
  %vm556 = vweird.f32 %v549
  %vm557 = vmor %vm555, %vm556
  %v558 = vsel %vm557, %v549, %v554
  %v559 = vrsqrt.pop %v401
  %v560 = vmul.f32 %v559, %v401
  %v561 = vmul.f32 %v560, %v559
  %v562 = vmul.f32 0.5, %v561
  %v563 = vsub.f32 1.5, %v562
  %v564 = vmul.f32 %v559, %v563
  %vm565 = vweird.f32 %v401
  %vm566 = vweird.f32 %v559
  %vm567 = vmor %vm565, %vm566
  %v568 = vsel %vm567, %v559, %v564
  %v569 = vrsqrt.pop %v402
  %v570 = vmul.f32 %v569, %v402
  %v571 = vmul.f32 %v570, %v569
  %v572 = vmul.f32 0.5, %v571
  %v573 = vsub.f32 1.5, %v572
  %v574 = vmul.f32 %v569, %v573
  %vm575 = vweird.f32 %v402
  %vm576 = vweird.f32 %v569
  %vm577 = vmor %vm575, %vm576
  %v578 = vsel %vm577, %v569, %v574
  %v579 = vrsqrt.pop %v403
  %v580 = vmul.f32 %v579, %v403
  %v581 = vmul.f32 %v580, %v579
  %v582 = vmul.f32 0.5, %v581
  %v583 = vsub.f32 1.5, %v582
  %v584 = vmul.f32 %v579, %v583
  %vm585 = vweird.f32 %v403
  %vm586 = vweird.f32 %v579
  %vm587 = vmor %vm585, %vm586
  %v588 = vsel %vm587, %v579, %v584
  %v589 = vrsqrt.pop %v404
  %v590 = vmul.f32 %v589, %v404
  %v591 = vmul.f32 %v590, %v589
  %v592 = vmul.f32 0.5, %v591
  %v593 = vsub.f32 1.5, %v592
  %v594 = vmul.f32 %v589, %v593
  %vm595 = vweird.f32 %v404
  %vm596 = vweird.f32 %v589
  %vm597 = vmor %vm595, %vm596
  %v598 = vsel %vm597, %v589, %v594
  %v599 = vrsqrt.pop %v405
  %v600 = vmul.f32 %v599, %v405
  %v601 = vmul.f32 %v600, %v599
  %v602 = vmul.f32 0.5, %v601
  %v603 = vsub.f32 1.5, %v602
  %v604 = vmul.f32 %v599, %v603
  %vm605 = vweird.f32 %v405
  %vm606 = vweird.f32 %v599
  %vm607 = vmor %vm605, %vm606
  %v608 = vsel %vm607, %v599, %v604
  %v609 = vrsqrt.pop %v406
  %v610 = vmul.f32 %v609, %v406
  %v611 = vmul.f32 %v610, %v609
  %v612 = vmul.f32 0.5, %v611
  %v613 = vsub.f32 1.5, %v612
  %v614 = vmul.f32 %v609, %v613
  %vm615 = vweird.f32 %v406
  %vm616 = vweird.f32 %v609
  %vm617 = vmor %vm615, %vm616
  %v618 = vsel %vm617, %v609, %v614
  %v619 = vrsqrt.pop %v407
  %v620 = vmul.f32 %v619, %v407
  %v621 = vmul.f32 %v620, %v619
  %v622 = vmul.f32 0.5, %v621
  %v623 = vsub.f32 1.5, %v622
  %v624 = vmul.f32 %v619, %v623
  %vm625 = vweird.f32 %v407
  %vm626 = vweird.f32 %v619
  %vm627 = vmor %vm625, %vm626
  %v628 = vsel %vm627, %v619, %v624
  %v629 = vrsqrt.pop %v408
  %v630 = vmul.f32 %v629, %v408
  %v631 = vmul.f32 %v630, %v629
  %v632 = vmul.f32 0.5, %v631
  %v633 = vsub.f32 1.5, %v632
  %v634 = vmul.f32 %v629, %v633
  %vm635 = vweird.f32 %v408
  %vm636 = vweird.f32 %v629
  %vm637 = vmor %vm635, %vm636
  %v638 = vsel %vm637, %v629, %v634
  %v639 = vrsqrt.pop %v409
  %v640 = vmul.f32 %v639, %v409
  %v641 = vmul.f32 %v640, %v639
  %v642 = vmul.f32 0.5, %v641
  %v643 = vsub.f32 1.5, %v642
  %v644 = vmul.f32 %v639, %v643
  %vm645 = vweird.f32 %v409
  %vm646 = vweird.f32 %v639
  %vm647 = vmor %vm645, %vm646
  %v648 = vsel %vm647, %v639, %v644
  %v649 = vrsqrt.pop %v410
  %v650 = vmul.f32 %v649, %v410
  %v651 = vmul.f32 %v650, %v649
  %v652 = vmul.f32 0.5, %v651
  %v653 = vsub.f32 1.5, %v652
  %v654 = vmul.f32 %v649, %v653
  %vm655 = vweird.f32 %v410
  %vm656 = vweird.f32 %v649
  %vm657 = vmor %vm655, %vm656
  %v658 = vsel %vm657, %v649, %v654
  %v659 = vrsqrt.pop %v411
  %v660 = vmul.f32 %v659, %v411
  %v661 = vmul.f32 %v660, %v659
  %v662 = vmul.f32 0.5, %v661
  %v663 = vsub.f32 1.5, %v662
  %v664 = vmul.f32 %v659, %v663
  %vm665 = vweird.f32 %v411
  %vm666 = vweird.f32 %v659
  %vm667 = vmor %vm665, %vm666
  %v668 = vsel %vm667, %v659, %v664
  %v669 = vrsqrt.pop %v412
  %v670 = vmul.f32 %v669, %v412
  %v671 = vmul.f32 %v670, %v669
  %v672 = vmul.f32 0.5, %v671
  %v673 = vsub.f32 1.5, %v672
  %v674 = vmul.f32 %v669, %v673
  %vm675 = vweird.f32 %v412
  %vm676 = vweird.f32 %v669
  %vm677 = vmor %vm675, %vm676
  %v678 = vsel %vm677, %v669, %v674
  %v679 = vrsqrt.pop %v413
  %v680 = vmul.f32 %v679, %v413
  %v681 = vmul.f32 %v680, %v679
  %v682 = vmul.f32 0.5, %v681
  %v683 = vsub.f32 1.5, %v682
  %v684 = vmul.f32 %v679, %v683
  %vm685 = vweird.f32 %v413
  %vm686 = vweird.f32 %v679
  %vm687 = vmor %vm685, %vm686
  %v688 = vsel %vm687, %v679, %v684
  %v689 = vrsqrt.pop %v414
  %v690 = vmul.f32 %v689, %v414
  %v691 = vmul.f32 %v690, %v689
  %v692 = vmul.f32 0.5, %v691
  %v693 = vsub.f32 1.5, %v692
  %v694 = vmul.f32 %v689, %v693
  %vm695 = vweird.f32 %v414
  %vm696 = vweird.f32 %v689
  %vm697 = vmor %vm695, %vm696
  %v698 = vsel %vm697, %v689, %v694
  %v699 = vrsqrt.pop %v415
  %v700 = vmul.f32 %v699, %v415
  %v701 = vmul.f32 %v700, %v699
  %v702 = vmul.f32 0.5, %v701
  %v703 = vsub.f32 1.5, %v702
  %v704 = vmul.f32 %v699, %v703
  %vm705 = vweird.f32 %v415
  %vm706 = vweird.f32 %v699
  %vm707 = vmor %vm705, %vm706
  %v708 = vsel %vm707, %v699, %v704
  %v709 = vrsqrt.pop %v416
  %v710 = vmul.f32 %v709, %v416
  %v711 = vmul.f32 %v710, %v709
  %v712 = vmul.f32 0.5, %v711
  %v713 = vsub.f32 1.5, %v712
  %v714 = vmul.f32 %v709, %v713
  %vm715 = vweird.f32 %v416
  %vm716 = vweird.f32 %v709
  %vm717 = vmor %vm715, %vm716
  %v718 = vsel %vm717, %v709, %v714
  %v719 = vrsqrt.pop %v417
  %v720 = vmul.f32 %v719, %v417
  %v721 = vmul.f32 %v720, %v719
  %v722 = vmul.f32 0.5, %v721
  %v723 = vsub.f32 1.5, %v722
  %v724 = vmul.f32 %v719, %v723
  %vm725 = vweird.f32 %v417
  %vm726 = vweird.f32 %v719
  %vm727 = vmor %vm725, %vm726
  %v728 = vsel %vm727, %v719, %v724
  %v729 = vrsqrt.pop %v418
  %v730 = vmul.f32 %v729, %v418
  %v731 = vmul.f32 %v730, %v729
  %v732 = vmul.f32 0.5, %v731
  %v733 = vsub.f32 1.5, %v732
  %v734 = vmul.f32 %v729, %v733
  %vm735 = vweird.f32 %v418
  %vm736 = vweird.f32 %v729
  %vm737 = vmor %vm735, %vm736
  %v738 = vsel %vm737, %v729, %v734
  %v739 = vmul.f32 %v195, %v428
  %v740 = vmul.f32 %v196, %v438
  %v741 = vmul.f32 %v197, %v448
  %v742 = vmul.f32 %v198, %v458
  %v743 = vmul.f32 %v199, %v468
  %v744 = vmul.f32 %v200, %v478
  %v745 = vmul.f32 %v201, %v488
  %v746 = vmul.f32 %v202, %v498
  %v747 = vmul.f32 %v203, %v508
  %v748 = vmul.f32 %v204, %v518
  %v749 = vmul.f32 %v205, %v528
  %v750 = vmul.f32 %v206, %v538
  %v751 = vmul.f32 %v207, %v548
  %v752 = vmul.f32 %v208, %v558
  %v753 = vmul.f32 %v209, %v568
  %v754 = vmul.f32 %v210, %v578
  %v755 = vmul.f32 %v211, %v588
  %v756 = vmul.f32 %v212, %v598
  %v757 = vmul.f32 %v213, %v608
  %v758 = vmul.f32 %v214, %v618
  %v759 = vmul.f32 %v215, %v628
  %v760 = vmul.f32 %v216, %v638
  %v761 = vmul.f32 %v217, %v648
  %v762 = vmul.f32 %v218, %v658
  %v763 = vmul.f32 %v219, %v668
  %v764 = vmul.f32 %v220, %v678
  %v765 = vmul.f32 %v221, %v688
  %v766 = vmul.f32 %v222, %v698
  %v767 = vmul.f32 %v223, %v708
  %v768 = vmul.f32 %v224, %v718
  %v769 = vmul.f32 %v225, %v728
  %v770 = vmul.f32 %v226, %v738
  %v771 = vld [vmem:[%s1] sm:$0x1]
  %v773 = vperm.slane %v771, 0
  %v775 = vmul.f32 %v739, %v773
  %v776 = vmul.f32 %v740, %v773
  %v777 = vmul.f32 %v741, %v773
  %v778 = vmul.f32 %v742, %v773
  %v779 = vmul.f32 %v743, %v773
  %v780 = vmul.f32 %v744, %v773
  %v781 = vmul.f32 %v745, %v773
  %v782 = vmul.f32 %v746, %v773
  %v783 = vmul.f32 %v747, %v773
  %v784 = vmul.f32 %v748, %v773
  %v785 = vmul.f32 %v749, %v773
  %v786 = vmul.f32 %v750, %v773
  %v787 = vmul.f32 %v751, %v773
  %v788 = vmul.f32 %v752, %v773
  %v789 = vmul.f32 %v753, %v773
  %v790 = vmul.f32 %v754, %v773
  %v791 = vmul.f32 %v755, %v773
  %v792 = vmul.f32 %v756, %v773
  %v793 = vmul.f32 %v757, %v773
  %v794 = vmul.f32 %v758, %v773
  %v795 = vmul.f32 %v759, %v773
  %v796 = vmul.f32 %v760, %v773
  %v797 = vmul.f32 %v761, %v773
  %v798 = vmul.f32 %v762, %v773
  %v799 = vmul.f32 %v763, %v773
  %v800 = vmul.f32 %v764, %v773
  %v801 = vmul.f32 %v765, %v773
  %v802 = vmul.f32 %v766, %v773
  %v803 = vmul.f32 %v767, %v773
  %v804 = vmul.f32 %v768, %v773
  %v805 = vmul.f32 %v769, %v773
  %v806 = vmul.f32 %v770, %v773
  %v807 = vld [vmem:[%s2] sm:$0x1]
  %v809 = vperm.slane %v807, 0
  %v811 = vadd.f32 %v775, %v809
  %v812 = vadd.f32 %v776, %v809
  %v813 = vadd.f32 %v777, %v809
  %v814 = vadd.f32 %v778, %v809
  %v815 = vadd.f32 %v779, %v809
  %v816 = vadd.f32 %v780, %v809
  %v817 = vadd.f32 %v781, %v809
  %v818 = vadd.f32 %v782, %v809
  %v819 = vadd.f32 %v783, %v809
  %v820 = vadd.f32 %v784, %v809
  %v821 = vadd.f32 %v785, %v809
  %v822 = vadd.f32 %v786, %v809
  %v823 = vadd.f32 %v787, %v809
  %v824 = vadd.f32 %v788, %v809
  %v825 = vadd.f32 %v789, %v809
  %v826 = vadd.f32 %v790, %v809
  %v827 = vadd.f32 %v791, %v809
  %v828 = vadd.f32 %v792, %v809
  %v829 = vadd.f32 %v793, %v809
  %v830 = vadd.f32 %v794, %v809
  %v831 = vadd.f32 %v795, %v809
  %v832 = vadd.f32 %v796, %v809
  %v833 = vadd.f32 %v797, %v809
  %v834 = vadd.f32 %v798, %v809
  %v835 = vadd.f32 %v799, %v809
  %v836 = vadd.f32 %v800, %v809
  %v837 = vadd.f32 %v801, %v809
  %v838 = vadd.f32 %v802, %v809
  %v839 = vadd.f32 %v803, %v809
  %v840 = vadd.f32 %v804, %v809
  %v841 = vadd.f32 %v805, %v809
  %v842 = vadd.f32 %v806, %v809
  %v843 = vpack.c.bf16 %v812, %v811
  %v844 = vpack.c.bf16 %v814, %v813
  %v845 = vpack.c.bf16 %v816, %v815
  %v846 = vpack.c.bf16 %v818, %v817
  %v847 = vpack.c.bf16 %v820, %v819
  %v848 = vpack.c.bf16 %v822, %v821
  %v849 = vpack.c.bf16 %v824, %v823
  %v850 = vpack.c.bf16 %v826, %v825
  %v851 = vpack.c.bf16 %v828, %v827
  %v852 = vpack.c.bf16 %v830, %v829
  %v853 = vpack.c.bf16 %v832, %v831
  %v854 = vpack.c.bf16 %v834, %v833
  %v855 = vpack.c.bf16 %v836, %v835
  %v856 = vpack.c.bf16 %v838, %v837
  %v857 = vpack.c.bf16 %v840, %v839
  %v858 = vpack.c.bf16 %v842, %v841
  %v859 = vld [vmem:[%s3] sm:$0xf]
  %v860 = vld [vmem:[%s3 + $0x4] sm:$0xf]
  %v861 = vld [vmem:[%s3 + $0x8] sm:$0xf]
  %v862 = vld [vmem:[%s3 + $0xc] sm:$0xf]
  %v863 = vld [vmem:[%s4] sm:$0x1]
  %v865 = vperm.slane %v863, 0
  %v871 = vunpack.c.l.b16 %v859
  %v872 = vunpack.c.l.b16 %v860
  %v873 = vunpack.c.l.b16 %v861
  %v874 = vunpack.c.l.b16 %v862
  %v875 = vpack.c.b16 %v872, %v871
  %v876 = vpack.c.b16 %v874, %v873
  %v880 = vsel %vm59, %v843, 0
  %v883 = vsel %vm59, %v844, 0
  %v886 = vsel %vm59, %v845, 0
  %v889 = vsel %vm59, %v846, 0
  %v892 = vsel %vm59, %v847, 0
  %v895 = vsel %vm59, %v848, 0
  %v898 = vsel %vm59, %v849, 0
  %v901 = vsel %vm59, %v850, 0
  %v904 = vsel %vm59, %v851, 0
  %v907 = vsel %vm59, %v852, 0
  %v910 = vsel %vm59, %v853, 0
  %v913 = vsel %vm59, %v854, 0
  %v916 = vsel %vm59, %v855, 0
  %v919 = vsel %vm59, %v856, 0
  %v922 = vsel %vm59, %v857, 0
  %v925 = vsel %vm59, %v858, 0
  %927 = vmatpush.bf16.msra.mxu0 0
  %928 = vmatpush.bf16.msra.mxu0 0
  %929 = vmatpush.bf16.msra.mxu0 0
  %930 = vmatpush.bf16.msra.mxu0 0
  %931 = vmatpush.bf16.msra.mxu0 0
  %932 = vmatpush.bf16.msra.mxu0 0
  %933 = vmatpush.bf16.msra.mxu0 %v876
  %934 = vmatpush.bf16.msra.mxu0 %v875
  %935 = vmatmul.bf16.gmra.mxu0 %v880
  %v936 = vpop.f32.mrf.mxu0
  %v937 = vadd.f32 %v865, %v936
  %v938 = vpop.f32.mrf.mxu0
  %v939 = vadd.f32 %v865, %v938
  %940 = vmatmul.bf16.gmra.mxu0 %v883
  %v941 = vpop.f32.mrf.mxu0
  %v942 = vadd.f32 %v865, %v941
  %v943 = vpop.f32.mrf.mxu0
  %v944 = vadd.f32 %v865, %v943
  %945 = vmatmul.bf16.gmra.mxu0 %v886
  %v946 = vpop.f32.mrf.mxu0
  %v947 = vadd.f32 %v865, %v946
  %v948 = vpop.f32.mrf.mxu0
  %v949 = vadd.f32 %v865, %v948
  %950 = vmatmul.bf16.gmra.mxu0 %v889
  %v951 = vpop.f32.mrf.mxu0
  %v952 = vadd.f32 %v865, %v951
  %v953 = vpop.f32.mrf.mxu0
  %v954 = vadd.f32 %v865, %v953
  %955 = vmatmul.bf16.gmra.mxu0 %v892
  %v956 = vpop.f32.mrf.mxu0
  %v957 = vadd.f32 %v865, %v956
  %v958 = vpop.f32.mrf.mxu0
  %v959 = vadd.f32 %v865, %v958
  %960 = vmatmul.bf16.gmra.mxu0 %v895
  %v961 = vpop.f32.mrf.mxu0
  %v962 = vadd.f32 %v865, %v961
  %v963 = vpop.f32.mrf.mxu0
  %v964 = vadd.f32 %v865, %v963
  %965 = vmatmul.bf16.gmra.mxu0 %v898
  %v966 = vpop.f32.mrf.mxu0
  %v967 = vadd.f32 %v865, %v966
  %v968 = vpop.f32.mrf.mxu0
  %v969 = vadd.f32 %v865, %v968
  %970 = vmatmul.bf16.gmra.mxu0 %v901
  %v971 = vpop.f32.mrf.mxu0
  %v972 = vadd.f32 %v865, %v971
  %v973 = vpop.f32.mrf.mxu0
  %v974 = vadd.f32 %v865, %v973
  %975 = vmatmul.bf16.gmra.mxu0 %v904
  %v976 = vpop.f32.mrf.mxu0
  %v977 = vadd.f32 %v865, %v976
  %v978 = vpop.f32.mrf.mxu0
  %v979 = vadd.f32 %v865, %v978
  %980 = vmatmul.bf16.gmra.mxu0 %v907
  %v981 = vpop.f32.mrf.mxu0
  %v982 = vadd.f32 %v865, %v981
  %v983 = vpop.f32.mrf.mxu0
  %v984 = vadd.f32 %v865, %v983
  %985 = vmatmul.bf16.gmra.mxu0 %v910
  %v986 = vpop.f32.mrf.mxu0
  %v987 = vadd.f32 %v865, %v986
  %v988 = vpop.f32.mrf.mxu0
  %v989 = vadd.f32 %v865, %v988
  %990 = vmatmul.bf16.gmra.mxu0 %v913
  %v991 = vpop.f32.mrf.mxu0
  %v992 = vadd.f32 %v865, %v991
  %v993 = vpop.f32.mrf.mxu0
  %v994 = vadd.f32 %v865, %v993
  %995 = vmatmul.bf16.gmra.mxu0 %v916
  %v996 = vpop.f32.mrf.mxu0
  %v997 = vadd.f32 %v865, %v996
  %v998 = vpop.f32.mrf.mxu0
  %v999 = vadd.f32 %v865, %v998
  %1000 = vmatmul.bf16.gmra.mxu0 %v919
  %v1001 = vpop.f32.mrf.mxu0
  %v1002 = vadd.f32 %v865, %v1001
  %v1003 = vpop.f32.mrf.mxu0
  %v1004 = vadd.f32 %v865, %v1003
  %1005 = vmatmul.bf16.gmra.mxu0 %v922
  %v1006 = vpop.f32.mrf.mxu0
  %v1007 = vadd.f32 %v865, %v1006
  %v1008 = vpop.f32.mrf.mxu0
  %v1009 = vadd.f32 %v865, %v1008
  %1010 = vmatmul.bf16.gmra.mxu0 %v925
  %v1011 = vpop.f32.mrf.mxu0
  %v1012 = vadd.f32 %v865, %v1011
  %v1013 = vpop.f32.mrf.mxu0
  %v1014 = vadd.f32 %v865, %v1013
  %1015 = vdwg.mxu0
  %v1016 = vmul.f32 %v937, 0.5
  %v1017 = vmul.f32 %v939, 0.5
  %v1018 = vmul.f32 %v942, 0.5
  %v1019 = vmul.f32 %v944, 0.5
  %v1020 = vmul.f32 %v947, 0.5
  %v1021 = vmul.f32 %v949, 0.5
  %v1022 = vmul.f32 %v952, 0.5
  %v1023 = vmul.f32 %v954, 0.5
  %v1024 = vmul.f32 %v957, 0.5
  %v1025 = vmul.f32 %v959, 0.5
  %v1026 = vmul.f32 %v962, 0.5
  %v1027 = vmul.f32 %v964, 0.5
  %v1028 = vmul.f32 %v967, 0.5
  %v1029 = vmul.f32 %v969, 0.5
  %v1030 = vmul.f32 %v972, 0.5
  %v1031 = vmul.f32 %v974, 0.5
  %v1032 = vmul.f32 %v977, 0.5
  %v1033 = vmul.f32 %v979, 0.5
  %v1034 = vmul.f32 %v982, 0.5
  %v1035 = vmul.f32 %v984, 0.5
  %v1036 = vmul.f32 %v987, 0.5
  %v1037 = vmul.f32 %v989, 0.5
  %v1038 = vmul.f32 %v992, 0.5
  %v1039 = vmul.f32 %v994, 0.5
  %v1040 = vmul.f32 %v997, 0.5
  %v1041 = vmul.f32 %v999, 0.5
  %v1042 = vmul.f32 %v1002, 0.5
  %v1043 = vmul.f32 %v1004, 0.5
  %v1044 = vmul.f32 %v1007, 0.5
  %v1045 = vmul.f32 %v1009, 0.5
  %v1046 = vmul.f32 %v1012, 0.5
  %v1047 = vmul.f32 %v1014, 0.5
  %v1048 = vmul.f32 %v937, 0.70710677
  %v1049 = vmul.f32 %v939, 0.70710677
  %v1050 = vmul.f32 %v942, 0.70710677
  %v1051 = vmul.f32 %v944, 0.70710677
  %v1052 = vmul.f32 %v947, 0.70710677
  %v1053 = vmul.f32 %v949, 0.70710677
  %v1054 = vmul.f32 %v952, 0.70710677
  %v1055 = vmul.f32 %v954, 0.70710677
  %v1056 = vmul.f32 %v957, 0.70710677
  %v1057 = vmul.f32 %v959, 0.70710677
  %v1058 = vmul.f32 %v962, 0.70710677
  %v1059 = vmul.f32 %v964, 0.70710677
  %v1060 = vmul.f32 %v967, 0.70710677
  %v1061 = vmul.f32 %v969, 0.70710677
  %v1062 = vmul.f32 %v972, 0.70710677
  %v1063 = vmul.f32 %v974, 0.70710677
  %v1064 = vmul.f32 %v977, 0.70710677
  %v1065 = vmul.f32 %v979, 0.70710677
  %v1066 = vmul.f32 %v982, 0.70710677
  %v1067 = vmul.f32 %v984, 0.70710677
  %v1068 = vmul.f32 %v987, 0.70710677
  %v1069 = vmul.f32 %v989, 0.70710677
  %v1070 = vmul.f32 %v992, 0.70710677
  %v1071 = vmul.f32 %v994, 0.70710677
  %v1072 = vmul.f32 %v997, 0.70710677
  %v1073 = vmul.f32 %v999, 0.70710677
  %v1074 = vmul.f32 %v1002, 0.70710677
  %v1075 = vmul.f32 %v1004, 0.70710677
  %v1076 = vmul.f32 %v1007, 0.70710677
  %v1077 = vmul.f32 %v1009, 0.70710677
  %v1078 = vmul.f32 %v1012, 0.70710677
  %v1079 = vmul.f32 %v1014, 0.70710677
  %v1080 = vmul.f32 %v1048, %v1048
  %v1081 = vmin.f32 16.0, %v1080
  %v1082 = vmul.f32 %v1081, 2.1237322e-06
  %v1083 = vadd.f32 %v1082, 0.00028619796
  %v1084 = vmul.f32 %v1081, %v1083
  %v1085 = vadd.f32 %v1084, 0.0036580483
  %v1086 = vmul.f32 %v1081, %v1085
  %v1087 = vadd.f32 %v1086, 0.05243302
  %v1088 = vmul.f32 %v1081, %v1087
  %v1089 = vadd.f32 %v1088, 0.18741608
  %v1090 = vmul.f32 %v1081, %v1089
  %v1091 = vadd.f32 %v1090, 1.1283791
  %v1092 = vmul.f32 %v1048, %v1091
  %v1093 = vmul.f32 %v1081, 3.8918573e-05
  %v1094 = vadd.f32 %v1093, 0.001143296
  %v1095 = vmul.f32 %v1081, %v1094
  %v1096 = vadd.f32 %v1095, 0.014752088
  %v1097 = vmul.f32 %v1081, %v1096
  %v1098 = vadd.f32 %v1097, 0.112945676
  %v1099 = vmul.f32 %v1081, %v1098
  %v1100 = vadd.f32 %v1099, 0.4994258
  %v1101 = vmul.f32 %v1081, %v1100
  %v1102 = vadd.f32 %v1101, 1.0
  %v1103 = vrcp.pop %v1102
  %v1104 = vmul.f32 %v1102, %v1103
  %v1105 = vsub.f32 1.0, %v1104
  %v1106 = vmul.f32 %v1103, %v1105
  %v1107 = vadd.f32 %v1103, %v1106
  %vm1108 = vweird.f32 %v1102
  %vm1109 = vweird.f32 %v1103
  %vm1110 = vmor %vm1108, %vm1109
  %v1111 = vsel %vm1110, %v1103, %v1107
  %v1112 = vand.u32 2147483647, %v1102
  %vm1113 = vcmp.eq.f32.partialorder %v1112, 8.507059e+37
  %v1114 = vand.u32 %v1102, 2147483648
  %v1115 = vor.u32 1.1754944e-38, %v1114
  %v1116 = vsel %vm1113, %v1115, %v1111
  %v1117 = vmul.f32 %v1092, %v1116
  %v1118 = vmin.f32 %v1117, 1.0
  %v1119 = vmax.f32 %v1118, -1.0
  %v1120 = vmul.f32 %v1049, %v1049
  %v1121 = vmin.f32 16.0, %v1120
  %v1122 = vmul.f32 %v1121, 2.1237322e-06
  %v1123 = vadd.f32 %v1122, 0.00028619796
  %v1124 = vmul.f32 %v1121, %v1123
  %v1125 = vadd.f32 %v1124, 0.0036580483
  %v1126 = vmul.f32 %v1121, %v1125
  %v1127 = vadd.f32 %v1126, 0.05243302
  %v1128 = vmul.f32 %v1121, %v1127
  %v1129 = vadd.f32 %v1128, 0.18741608
  %v1130 = vmul.f32 %v1121, %v1129
  %v1131 = vadd.f32 %v1130, 1.1283791
  %v1132 = vmul.f32 %v1049, %v1131
  %v1133 = vmul.f32 %v1121, 3.8918573e-05
  %v1134 = vadd.f32 %v1133, 0.001143296
  %v1135 = vmul.f32 %v1121, %v1134
  %v1136 = vadd.f32 %v1135, 0.014752088
  %v1137 = vmul.f32 %v1121, %v1136
  %v1138 = vadd.f32 %v1137, 0.112945676
  %v1139 = vmul.f32 %v1121, %v1138
  %v1140 = vadd.f32 %v1139, 0.4994258
  %v1141 = vmul.f32 %v1121, %v1140
  %v1142 = vadd.f32 %v1141, 1.0
  %v1143 = vrcp.pop %v1142
  %v1144 = vmul.f32 %v1142, %v1143
  %v1145 = vsub.f32 1.0, %v1144
  %v1146 = vmul.f32 %v1143, %v1145
  %v1147 = vadd.f32 %v1143, %v1146
  %vm1148 = vweird.f32 %v1142
  %vm1149 = vweird.f32 %v1143
  %vm1150 = vmor %vm1148, %vm1149
  %v1151 = vsel %vm1150, %v1143, %v1147
  %v1152 = vand.u32 2147483647, %v1142
  %vm1153 = vcmp.eq.f32.partialorder %v1152, 8.507059e+37
  %v1154 = vand.u32 %v1142, 2147483648
  %v1155 = vor.u32 1.1754944e-38, %v1154
  %v1156 = vsel %vm1153, %v1155, %v1151
  %v1157 = vmul.f32 %v1132, %v1156
  %v1158 = vmin.f32 %v1157, 1.0
  %v1159 = vmax.f32 %v1158, -1.0
  %v1160 = vmul.f32 %v1050, %v1050
  %v1161 = vmin.f32 16.0, %v1160
  %v1162 = vmul.f32 %v1161, 2.1237322e-06
  %v1163 = vadd.f32 %v1162, 0.00028619796
  %v1164 = vmul.f32 %v1161, %v1163
  %v1165 = vadd.f32 %v1164, 0.0036580483
  %v1166 = vmul.f32 %v1161, %v1165
  %v1167 = vadd.f32 %v1166, 0.05243302
  %v1168 = vmul.f32 %v1161, %v1167
  %v1169 = vadd.f32 %v1168, 0.18741608
  %v1170 = vmul.f32 %v1161, %v1169
  %v1171 = vadd.f32 %v1170, 1.1283791
  %v1172 = vmul.f32 %v1050, %v1171
  %v1173 = vmul.f32 %v1161, 3.8918573e-05
  %v1174 = vadd.f32 %v1173, 0.001143296
  %v1175 = vmul.f32 %v1161, %v1174
  %v1176 = vadd.f32 %v1175, 0.014752088
  %v1177 = vmul.f32 %v1161, %v1176
  %v1178 = vadd.f32 %v1177, 0.112945676
  %v1179 = vmul.f32 %v1161, %v1178
  %v1180 = vadd.f32 %v1179, 0.4994258
  %v1181 = vmul.f32 %v1161, %v1180
  %v1182 = vadd.f32 %v1181, 1.0
  %v1183 = vrcp.pop %v1182
  %v1184 = vmul.f32 %v1182, %v1183
  %v1185 = vsub.f32 1.0, %v1184
  %v1186 = vmul.f32 %v1183, %v1185
  %v1187 = vadd.f32 %v1183, %v1186
  %vm1188 = vweird.f32 %v1182
  %vm1189 = vweird.f32 %v1183
  %vm1190 = vmor %vm1188, %vm1189
  %v1191 = vsel %vm1190, %v1183, %v1187
  %v1192 = vand.u32 2147483647, %v1182
  %vm1193 = vcmp.eq.f32.partialorder %v1192, 8.507059e+37
  %v1194 = vand.u32 %v1182, 2147483648
  %v1195 = vor.u32 1.1754944e-38, %v1194
  %v1196 = vsel %vm1193, %v1195, %v1191
  %v1197 = vmul.f32 %v1172, %v1196
  %v1198 = vmin.f32 %v1197, 1.0
  %v1199 = vmax.f32 %v1198, -1.0
  %v1200 = vmul.f32 %v1051, %v1051
  %v1201 = vmin.f32 16.0, %v1200
  %v1202 = vmul.f32 %v1201, 2.1237322e-06
  %v1203 = vadd.f32 %v1202, 0.00028619796
  %v1204 = vmul.f32 %v1201, %v1203
  %v1205 = vadd.f32 %v1204, 0.0036580483
  %v1206 = vmul.f32 %v1201, %v1205
  %v1207 = vadd.f32 %v1206, 0.05243302
  %v1208 = vmul.f32 %v1201, %v1207
  %v1209 = vadd.f32 %v1208, 0.18741608
  %v1210 = vmul.f32 %v1201, %v1209
  %v1211 = vadd.f32 %v1210, 1.1283791
  %v1212 = vmul.f32 %v1051, %v1211
  %v1213 = vmul.f32 %v1201, 3.8918573e-05
  %v1214 = vadd.f32 %v1213, 0.001143296
  %v1215 = vmul.f32 %v1201, %v1214
  %v1216 = vadd.f32 %v1215, 0.014752088
  %v1217 = vmul.f32 %v1201, %v1216
  %v1218 = vadd.f32 %v1217, 0.112945676
  %v1219 = vmul.f32 %v1201, %v1218
  %v1220 = vadd.f32 %v1219, 0.4994258
  %v1221 = vmul.f32 %v1201, %v1220
  %v1222 = vadd.f32 %v1221, 1.0
  %v1223 = vrcp.pop %v1222
  %v1224 = vmul.f32 %v1222, %v1223
  %v1225 = vsub.f32 1.0, %v1224
  %v1226 = vmul.f32 %v1223, %v1225
  %v1227 = vadd.f32 %v1223, %v1226
  %vm1228 = vweird.f32 %v1222
  %vm1229 = vweird.f32 %v1223
  %vm1230 = vmor %vm1228, %vm1229
  %v1231 = vsel %vm1230, %v1223, %v1227
  %v1232 = vand.u32 2147483647, %v1222
  %vm1233 = vcmp.eq.f32.partialorder %v1232, 8.507059e+37
  %v1234 = vand.u32 %v1222, 2147483648
  %v1235 = vor.u32 1.1754944e-38, %v1234
  %v1236 = vsel %vm1233, %v1235, %v1231
  %v1237 = vmul.f32 %v1212, %v1236
  %v1238 = vmin.f32 %v1237, 1.0
  %v1239 = vmax.f32 %v1238, -1.0
  %v1240 = vmul.f32 %v1052, %v1052
  %v1241 = vmin.f32 16.0, %v1240
  %v1242 = vmul.f32 %v1241, 2.1237322e-06
  %v1243 = vadd.f32 %v1242, 0.00028619796
  %v1244 = vmul.f32 %v1241, %v1243
  %v1245 = vadd.f32 %v1244, 0.0036580483
  %v1246 = vmul.f32 %v1241, %v1245
  %v1247 = vadd.f32 %v1246, 0.05243302
  %v1248 = vmul.f32 %v1241, %v1247
  %v1249 = vadd.f32 %v1248, 0.18741608
  %v1250 = vmul.f32 %v1241, %v1249
  %v1251 = vadd.f32 %v1250, 1.1283791
  %v1252 = vmul.f32 %v1052, %v1251
  %v1253 = vmul.f32 %v1241, 3.8918573e-05
  %v1254 = vadd.f32 %v1253, 0.001143296
  %v1255 = vmul.f32 %v1241, %v1254
  %v1256 = vadd.f32 %v1255, 0.014752088
  %v1257 = vmul.f32 %v1241, %v1256
  %v1258 = vadd.f32 %v1257, 0.112945676
  %v1259 = vmul.f32 %v1241, %v1258
  %v1260 = vadd.f32 %v1259, 0.4994258
  %v1261 = vmul.f32 %v1241, %v1260
  %v1262 = vadd.f32 %v1261, 1.0
  %v1263 = vrcp.pop %v1262
  %v1264 = vmul.f32 %v1262, %v1263
  %v1265 = vsub.f32 1.0, %v1264
  %v1266 = vmul.f32 %v1263, %v1265
  %v1267 = vadd.f32 %v1263, %v1266
  %vm1268 = vweird.f32 %v1262
  %vm1269 = vweird.f32 %v1263
  %vm1270 = vmor %vm1268, %vm1269
  %v1271 = vsel %vm1270, %v1263, %v1267
  %v1272 = vand.u32 2147483647, %v1262
  %vm1273 = vcmp.eq.f32.partialorder %v1272, 8.507059e+37
  %v1274 = vand.u32 %v1262, 2147483648
  %v1275 = vor.u32 1.1754944e-38, %v1274
  %v1276 = vsel %vm1273, %v1275, %v1271
  %v1277 = vmul.f32 %v1252, %v1276
  %v1278 = vmin.f32 %v1277, 1.0
  %v1279 = vmax.f32 %v1278, -1.0
  %v1280 = vmul.f32 %v1053, %v1053
  %v1281 = vmin.f32 16.0, %v1280
  %v1282 = vmul.f32 %v1281, 2.1237322e-06
  %v1283 = vadd.f32 %v1282, 0.00028619796
  %v1284 = vmul.f32 %v1281, %v1283
  %v1285 = vadd.f32 %v1284, 0.0036580483
  %v1286 = vmul.f32 %v1281, %v1285
  %v1287 = vadd.f32 %v1286, 0.05243302
  %v1288 = vmul.f32 %v1281, %v1287
  %v1289 = vadd.f32 %v1288, 0.18741608
  %v1290 = vmul.f32 %v1281, %v1289
  %v1291 = vadd.f32 %v1290, 1.1283791
  %v1292 = vmul.f32 %v1053, %v1291
  %v1293 = vmul.f32 %v1281, 3.8918573e-05
  %v1294 = vadd.f32 %v1293, 0.001143296
  %v1295 = vmul.f32 %v1281, %v1294
  %v1296 = vadd.f32 %v1295, 0.014752088
  %v1297 = vmul.f32 %v1281, %v1296
  %v1298 = vadd.f32 %v1297, 0.112945676
  %v1299 = vmul.f32 %v1281, %v1298
  %v1300 = vadd.f32 %v1299, 0.4994258
  %v1301 = vmul.f32 %v1281, %v1300
  %v1302 = vadd.f32 %v1301, 1.0
  %v1303 = vrcp.pop %v1302
  %v1304 = vmul.f32 %v1302, %v1303
  %v1305 = vsub.f32 1.0, %v1304
  %v1306 = vmul.f32 %v1303, %v1305
  %v1307 = vadd.f32 %v1303, %v1306
  %vm1308 = vweird.f32 %v1302
  %vm1309 = vweird.f32 %v1303
  %vm1310 = vmor %vm1308, %vm1309
  %v1311 = vsel %vm1310, %v1303, %v1307
  %v1312 = vand.u32 2147483647, %v1302
  %vm1313 = vcmp.eq.f32.partialorder %v1312, 8.507059e+37
  %v1314 = vand.u32 %v1302, 2147483648
  %v1315 = vor.u32 1.1754944e-38, %v1314
  %v1316 = vsel %vm1313, %v1315, %v1311
  %v1317 = vmul.f32 %v1292, %v1316
  %v1318 = vmin.f32 %v1317, 1.0
  %v1319 = vmax.f32 %v1318, -1.0
  %v1320 = vmul.f32 %v1054, %v1054
  %v1321 = vmin.f32 16.0, %v1320
  %v1322 = vmul.f32 %v1321, 2.1237322e-06
  %v1323 = vadd.f32 %v1322, 0.00028619796
  %v1324 = vmul.f32 %v1321, %v1323
  %v1325 = vadd.f32 %v1324, 0.0036580483
  %v1326 = vmul.f32 %v1321, %v1325
  %v1327 = vadd.f32 %v1326, 0.05243302
  %v1328 = vmul.f32 %v1321, %v1327
  %v1329 = vadd.f32 %v1328, 0.18741608
  %v1330 = vmul.f32 %v1321, %v1329
  %v1331 = vadd.f32 %v1330, 1.1283791
  %v1332 = vmul.f32 %v1054, %v1331
  %v1333 = vmul.f32 %v1321, 3.8918573e-05
  %v1334 = vadd.f32 %v1333, 0.001143296
  %v1335 = vmul.f32 %v1321, %v1334
  %v1336 = vadd.f32 %v1335, 0.014752088
  %v1337 = vmul.f32 %v1321, %v1336
  %v1338 = vadd.f32 %v1337, 0.112945676
  %v1339 = vmul.f32 %v1321, %v1338
  %v1340 = vadd.f32 %v1339, 0.4994258
  %v1341 = vmul.f32 %v1321, %v1340
  %v1342 = vadd.f32 %v1341, 1.0
  %v1343 = vrcp.pop %v1342
  %v1344 = vmul.f32 %v1342, %v1343
  %v1345 = vsub.f32 1.0, %v1344
  %v1346 = vmul.f32 %v1343, %v1345
  %v1347 = vadd.f32 %v1343, %v1346
  %vm1348 = vweird.f32 %v1342
  %vm1349 = vweird.f32 %v1343
  %vm1350 = vmor %vm1348, %vm1349
  %v1351 = vsel %vm1350, %v1343, %v1347
  %v1352 = vand.u32 2147483647, %v1342
  %vm1353 = vcmp.eq.f32.partialorder %v1352, 8.507059e+37
  %v1354 = vand.u32 %v1342, 2147483648
  %v1355 = vor.u32 1.1754944e-38, %v1354
  %v1356 = vsel %vm1353, %v1355, %v1351
  %v1357 = vmul.f32 %v1332, %v1356
  %v1358 = vmin.f32 %v1357, 1.0
  %v1359 = vmax.f32 %v1358, -1.0
  %v1360 = vmul.f32 %v1055, %v1055
  %v1361 = vmin.f32 16.0, %v1360
  %v1362 = vmul.f32 %v1361, 2.1237322e-06
  %v1363 = vadd.f32 %v1362, 0.00028619796
  %v1364 = vmul.f32 %v1361, %v1363
  %v1365 = vadd.f32 %v1364, 0.0036580483
  %v1366 = vmul.f32 %v1361, %v1365
  %v1367 = vadd.f32 %v1366, 0.05243302
  %v1368 = vmul.f32 %v1361, %v1367
  %v1369 = vadd.f32 %v1368, 0.18741608
  %v1370 = vmul.f32 %v1361, %v1369
  %v1371 = vadd.f32 %v1370, 1.1283791
  %v1372 = vmul.f32 %v1055, %v1371
  %v1373 = vmul.f32 %v1361, 3.8918573e-05
  %v1374 = vadd.f32 %v1373, 0.001143296
  %v1375 = vmul.f32 %v1361, %v1374
  %v1376 = vadd.f32 %v1375, 0.014752088
  %v1377 = vmul.f32 %v1361, %v1376
  %v1378 = vadd.f32 %v1377, 0.112945676
  %v1379 = vmul.f32 %v1361, %v1378
  %v1380 = vadd.f32 %v1379, 0.4994258
  %v1381 = vmul.f32 %v1361, %v1380
  %v1382 = vadd.f32 %v1381, 1.0
  %v1383 = vrcp.pop %v1382
  %v1384 = vmul.f32 %v1382, %v1383
  %v1385 = vsub.f32 1.0, %v1384
  %v1386 = vmul.f32 %v1383, %v1385
  %v1387 = vadd.f32 %v1383, %v1386
  %vm1388 = vweird.f32 %v1382
  %vm1389 = vweird.f32 %v1383
  %vm1390 = vmor %vm1388, %vm1389
  %v1391 = vsel %vm1390, %v1383, %v1387
  %v1392 = vand.u32 2147483647, %v1382
  %vm1393 = vcmp.eq.f32.partialorder %v1392, 8.507059e+37
  %v1394 = vand.u32 %v1382, 2147483648
  %v1395 = vor.u32 1.1754944e-38, %v1394
  %v1396 = vsel %vm1393, %v1395, %v1391
  %v1397 = vmul.f32 %v1372, %v1396
  %v1398 = vmin.f32 %v1397, 1.0
  %v1399 = vmax.f32 %v1398, -1.0
  %v1400 = vmul.f32 %v1056, %v1056
  %v1401 = vmin.f32 16.0, %v1400
  %v1402 = vmul.f32 %v1401, 2.1237322e-06
  %v1403 = vadd.f32 %v1402, 0.00028619796
  %v1404 = vmul.f32 %v1401, %v1403
  %v1405 = vadd.f32 %v1404, 0.0036580483
  %v1406 = vmul.f32 %v1401, %v1405
  %v1407 = vadd.f32 %v1406, 0.05243302
  %v1408 = vmul.f32 %v1401, %v1407
  %v1409 = vadd.f32 %v1408, 0.18741608
  %v1410 = vmul.f32 %v1401, %v1409
  %v1411 = vadd.f32 %v1410, 1.1283791
  %v1412 = vmul.f32 %v1056, %v1411
  %v1413 = vmul.f32 %v1401, 3.8918573e-05
  %v1414 = vadd.f32 %v1413, 0.001143296
  %v1415 = vmul.f32 %v1401, %v1414
  %v1416 = vadd.f32 %v1415, 0.014752088
  %v1417 = vmul.f32 %v1401, %v1416
  %v1418 = vadd.f32 %v1417, 0.112945676
  %v1419 = vmul.f32 %v1401, %v1418
  %v1420 = vadd.f32 %v1419, 0.4994258
  %v1421 = vmul.f32 %v1401, %v1420
  %v1422 = vadd.f32 %v1421, 1.0
  %v1423 = vrcp.pop %v1422
  %v1424 = vmul.f32 %v1422, %v1423
  %v1425 = vsub.f32 1.0, %v1424
  %v1426 = vmul.f32 %v1423, %v1425
  %v1427 = vadd.f32 %v1423, %v1426
  %vm1428 = vweird.f32 %v1422
  %vm1429 = vweird.f32 %v1423
  %vm1430 = vmor %vm1428, %vm1429
  %v1431 = vsel %vm1430, %v1423, %v1427
  %v1432 = vand.u32 2147483647, %v1422
  %vm1433 = vcmp.eq.f32.partialorder %v1432, 8.507059e+37
  %v1434 = vand.u32 %v1422, 2147483648
  %v1435 = vor.u32 1.1754944e-38, %v1434
  %v1436 = vsel %vm1433, %v1435, %v1431
  %v1437 = vmul.f32 %v1412, %v1436
  %v1438 = vmin.f32 %v1437, 1.0
  %v1439 = vmax.f32 %v1438, -1.0
  %v1440 = vmul.f32 %v1057, %v1057
  %v1441 = vmin.f32 16.0, %v1440
  %v1442 = vmul.f32 %v1441, 2.1237322e-06
  %v1443 = vadd.f32 %v1442, 0.00028619796
  %v1444 = vmul.f32 %v1441, %v1443
  %v1445 = vadd.f32 %v1444, 0.0036580483
  %v1446 = vmul.f32 %v1441, %v1445
  %v1447 = vadd.f32 %v1446, 0.05243302
  %v1448 = vmul.f32 %v1441, %v1447
  %v1449 = vadd.f32 %v1448, 0.18741608
  %v1450 = vmul.f32 %v1441, %v1449
  %v1451 = vadd.f32 %v1450, 1.1283791
  %v1452 = vmul.f32 %v1057, %v1451
  %v1453 = vmul.f32 %v1441, 3.8918573e-05
  %v1454 = vadd.f32 %v1453, 0.001143296
  %v1455 = vmul.f32 %v1441, %v1454
  %v1456 = vadd.f32 %v1455, 0.014752088
  %v1457 = vmul.f32 %v1441, %v1456
  %v1458 = vadd.f32 %v1457, 0.112945676
  %v1459 = vmul.f32 %v1441, %v1458
  %v1460 = vadd.f32 %v1459, 0.4994258
  %v1461 = vmul.f32 %v1441, %v1460
  %v1462 = vadd.f32 %v1461, 1.0
  %v1463 = vrcp.pop %v1462
  %v1464 = vmul.f32 %v1462, %v1463
  %v1465 = vsub.f32 1.0, %v1464
  %v1466 = vmul.f32 %v1463, %v1465
  %v1467 = vadd.f32 %v1463, %v1466
  %vm1468 = vweird.f32 %v1462
  %vm1469 = vweird.f32 %v1463
  %vm1470 = vmor %vm1468, %vm1469
  %v1471 = vsel %vm1470, %v1463, %v1467
  %v1472 = vand.u32 2147483647, %v1462
  %vm1473 = vcmp.eq.f32.partialorder %v1472, 8.507059e+37
  %v1474 = vand.u32 %v1462, 2147483648
  %v1475 = vor.u32 1.1754944e-38, %v1474
  %v1476 = vsel %vm1473, %v1475, %v1471
  %v1477 = vmul.f32 %v1452, %v1476
  %v1478 = vmin.f32 %v1477, 1.0
  %v1479 = vmax.f32 %v1478, -1.0
  %v1480 = vmul.f32 %v1058, %v1058
  %v1481 = vmin.f32 16.0, %v1480
  %v1482 = vmul.f32 %v1481, 2.1237322e-06
  %v1483 = vadd.f32 %v1482, 0.00028619796
  %v1484 = vmul.f32 %v1481, %v1483
  %v1485 = vadd.f32 %v1484, 0.0036580483
  %v1486 = vmul.f32 %v1481, %v1485
  %v1487 = vadd.f32 %v1486, 0.05243302
  %v1488 = vmul.f32 %v1481, %v1487
  %v1489 = vadd.f32 %v1488, 0.18741608
  %v1490 = vmul.f32 %v1481, %v1489
  %v1491 = vadd.f32 %v1490, 1.1283791
  %v1492 = vmul.f32 %v1058, %v1491
  %v1493 = vmul.f32 %v1481, 3.8918573e-05
  %v1494 = vadd.f32 %v1493, 0.001143296
  %v1495 = vmul.f32 %v1481, %v1494
  %v1496 = vadd.f32 %v1495, 0.014752088
  %v1497 = vmul.f32 %v1481, %v1496
  %v1498 = vadd.f32 %v1497, 0.112945676
  %v1499 = vmul.f32 %v1481, %v1498
  %v1500 = vadd.f32 %v1499, 0.4994258
  %v1501 = vmul.f32 %v1481, %v1500
  %v1502 = vadd.f32 %v1501, 1.0
  %v1503 = vrcp.pop %v1502
  %v1504 = vmul.f32 %v1502, %v1503
  %v1505 = vsub.f32 1.0, %v1504
  %v1506 = vmul.f32 %v1503, %v1505
  %v1507 = vadd.f32 %v1503, %v1506
  %vm1508 = vweird.f32 %v1502
  %vm1509 = vweird.f32 %v1503
  %vm1510 = vmor %vm1508, %vm1509
  %v1511 = vsel %vm1510, %v1503, %v1507
  %v1512 = vand.u32 2147483647, %v1502
  %vm1513 = vcmp.eq.f32.partialorder %v1512, 8.507059e+37
  %v1514 = vand.u32 %v1502, 2147483648
  %v1515 = vor.u32 1.1754944e-38, %v1514
  %v1516 = vsel %vm1513, %v1515, %v1511
  %v1517 = vmul.f32 %v1492, %v1516
  %v1518 = vmin.f32 %v1517, 1.0
  %v1519 = vmax.f32 %v1518, -1.0
  %v1520 = vmul.f32 %v1059, %v1059
  %v1521 = vmin.f32 16.0, %v1520
  %v1522 = vmul.f32 %v1521, 2.1237322e-06
  %v1523 = vadd.f32 %v1522, 0.00028619796
  %v1524 = vmul.f32 %v1521, %v1523
  %v1525 = vadd.f32 %v1524, 0.0036580483
  %v1526 = vmul.f32 %v1521, %v1525
  %v1527 = vadd.f32 %v1526, 0.05243302
  %v1528 = vmul.f32 %v1521, %v1527
  %v1529 = vadd.f32 %v1528, 0.18741608
  %v1530 = vmul.f32 %v1521, %v1529
  %v1531 = vadd.f32 %v1530, 1.1283791
  %v1532 = vmul.f32 %v1059, %v1531
  %v1533 = vmul.f32 %v1521, 3.8918573e-05
  %v1534 = vadd.f32 %v1533, 0.001143296
  %v1535 = vmul.f32 %v1521, %v1534
  %v1536 = vadd.f32 %v1535, 0.014752088
  %v1537 = vmul.f32 %v1521, %v1536
  %v1538 = vadd.f32 %v1537, 0.112945676
  %v1539 = vmul.f32 %v1521, %v1538
  %v1540 = vadd.f32 %v1539, 0.4994258
  %v1541 = vmul.f32 %v1521, %v1540
  %v1542 = vadd.f32 %v1541, 1.0
  %v1543 = vrcp.pop %v1542
  %v1544 = vmul.f32 %v1542, %v1543
  %v1545 = vsub.f32 1.0, %v1544
  %v1546 = vmul.f32 %v1543, %v1545
  %v1547 = vadd.f32 %v1543, %v1546
  %vm1548 = vweird.f32 %v1542
  %vm1549 = vweird.f32 %v1543
  %vm1550 = vmor %vm1548, %vm1549
  %v1551 = vsel %vm1550, %v1543, %v1547
  %v1552 = vand.u32 2147483647, %v1542
  %vm1553 = vcmp.eq.f32.partialorder %v1552, 8.507059e+37
  %v1554 = vand.u32 %v1542, 2147483648
  %v1555 = vor.u32 1.1754944e-38, %v1554
  %v1556 = vsel %vm1553, %v1555, %v1551
  %v1557 = vmul.f32 %v1532, %v1556
  %v1558 = vmin.f32 %v1557, 1.0
  %v1559 = vmax.f32 %v1558, -1.0
  %v1560 = vmul.f32 %v1060, %v1060
  %v1561 = vmin.f32 16.0, %v1560
  %v1562 = vmul.f32 %v1561, 2.1237322e-06
  %v1563 = vadd.f32 %v1562, 0.00028619796
  %v1564 = vmul.f32 %v1561, %v1563
  %v1565 = vadd.f32 %v1564, 0.0036580483
  %v1566 = vmul.f32 %v1561, %v1565
  %v1567 = vadd.f32 %v1566, 0.05243302
  %v1568 = vmul.f32 %v1561, %v1567
  %v1569 = vadd.f32 %v1568, 0.18741608
  %v1570 = vmul.f32 %v1561, %v1569
  %v1571 = vadd.f32 %v1570, 1.1283791
  %v1572 = vmul.f32 %v1060, %v1571
  %v1573 = vmul.f32 %v1561, 3.8918573e-05
  %v1574 = vadd.f32 %v1573, 0.001143296
  %v1575 = vmul.f32 %v1561, %v1574
  %v1576 = vadd.f32 %v1575, 0.014752088
  %v1577 = vmul.f32 %v1561, %v1576
  %v1578 = vadd.f32 %v1577, 0.112945676
  %v1579 = vmul.f32 %v1561, %v1578
  %v1580 = vadd.f32 %v1579, 0.4994258
  %v1581 = vmul.f32 %v1561, %v1580
  %v1582 = vadd.f32 %v1581, 1.0
  %v1583 = vrcp.pop %v1582
  %v1584 = vmul.f32 %v1582, %v1583
  %v1585 = vsub.f32 1.0, %v1584
  %v1586 = vmul.f32 %v1583, %v1585
  %v1587 = vadd.f32 %v1583, %v1586
  %vm1588 = vweird.f32 %v1582
  %vm1589 = vweird.f32 %v1583
  %vm1590 = vmor %vm1588, %vm1589
  %v1591 = vsel %vm1590, %v1583, %v1587
  %v1592 = vand.u32 2147483647, %v1582
  %vm1593 = vcmp.eq.f32.partialorder %v1592, 8.507059e+37
  %v1594 = vand.u32 %v1582, 2147483648
  %v1595 = vor.u32 1.1754944e-38, %v1594
  %v1596 = vsel %vm1593, %v1595, %v1591
  %v1597 = vmul.f32 %v1572, %v1596
  %v1598 = vmin.f32 %v1597, 1.0
  %v1599 = vmax.f32 %v1598, -1.0
  %v1600 = vmul.f32 %v1061, %v1061
  %v1601 = vmin.f32 16.0, %v1600
  %v1602 = vmul.f32 %v1601, 2.1237322e-06
  %v1603 = vadd.f32 %v1602, 0.00028619796
  %v1604 = vmul.f32 %v1601, %v1603
  %v1605 = vadd.f32 %v1604, 0.0036580483
  %v1606 = vmul.f32 %v1601, %v1605
  %v1607 = vadd.f32 %v1606, 0.05243302
  %v1608 = vmul.f32 %v1601, %v1607
  %v1609 = vadd.f32 %v1608, 0.18741608
  %v1610 = vmul.f32 %v1601, %v1609
  %v1611 = vadd.f32 %v1610, 1.1283791
  %v1612 = vmul.f32 %v1061, %v1611
  %v1613 = vmul.f32 %v1601, 3.8918573e-05
  %v1614 = vadd.f32 %v1613, 0.001143296
  %v1615 = vmul.f32 %v1601, %v1614
  %v1616 = vadd.f32 %v1615, 0.014752088
  %v1617 = vmul.f32 %v1601, %v1616
  %v1618 = vadd.f32 %v1617, 0.112945676
  %v1619 = vmul.f32 %v1601, %v1618
  %v1620 = vadd.f32 %v1619, 0.4994258
  %v1621 = vmul.f32 %v1601, %v1620
  %v1622 = vadd.f32 %v1621, 1.0
  %v1623 = vrcp.pop %v1622
  %v1624 = vmul.f32 %v1622, %v1623
  %v1625 = vsub.f32 1.0, %v1624
  %v1626 = vmul.f32 %v1623, %v1625
  %v1627 = vadd.f32 %v1623, %v1626
  %vm1628 = vweird.f32 %v1622
  %vm1629 = vweird.f32 %v1623
  %vm1630 = vmor %vm1628, %vm1629
  %v1631 = vsel %vm1630, %v1623, %v1627
  %v1632 = vand.u32 2147483647, %v1622
  %vm1633 = vcmp.eq.f32.partialorder %v1632, 8.507059e+37
  %v1634 = vand.u32 %v1622, 2147483648
  %v1635 = vor.u32 1.1754944e-38, %v1634
  %v1636 = vsel %vm1633, %v1635, %v1631
  %v1637 = vmul.f32 %v1612, %v1636
  %v1638 = vmin.f32 %v1637, 1.0
  %v1639 = vmax.f32 %v1638, -1.0
  %v1640 = vmul.f32 %v1062, %v1062
  %v1641 = vmin.f32 16.0, %v1640
  %v1642 = vmul.f32 %v1641, 2.1237322e-06
  %v1643 = vadd.f32 %v1642, 0.00028619796
  %v1644 = vmul.f32 %v1641, %v1643
  %v1645 = vadd.f32 %v1644, 0.0036580483
  %v1646 = vmul.f32 %v1641, %v1645
  %v1647 = vadd.f32 %v1646, 0.05243302
  %v1648 = vmul.f32 %v1641, %v1647
  %v1649 = vadd.f32 %v1648, 0.18741608
  %v1650 = vmul.f32 %v1641, %v1649
  %v1651 = vadd.f32 %v1650, 1.1283791
  %v1652 = vmul.f32 %v1062, %v1651
  %v1653 = vmul.f32 %v1641, 3.8918573e-05
  %v1654 = vadd.f32 %v1653, 0.001143296
  %v1655 = vmul.f32 %v1641, %v1654
  %v1656 = vadd.f32 %v1655, 0.014752088
  %v1657 = vmul.f32 %v1641, %v1656
  %v1658 = vadd.f32 %v1657, 0.112945676
  %v1659 = vmul.f32 %v1641, %v1658
  %v1660 = vadd.f32 %v1659, 0.4994258
  %v1661 = vmul.f32 %v1641, %v1660
  %v1662 = vadd.f32 %v1661, 1.0
  %v1663 = vrcp.pop %v1662
  %v1664 = vmul.f32 %v1662, %v1663
  %v1665 = vsub.f32 1.0, %v1664
  %v1666 = vmul.f32 %v1663, %v1665
  %v1667 = vadd.f32 %v1663, %v1666
  %vm1668 = vweird.f32 %v1662
  %vm1669 = vweird.f32 %v1663
  %vm1670 = vmor %vm1668, %vm1669
  %v1671 = vsel %vm1670, %v1663, %v1667
  %v1672 = vand.u32 2147483647, %v1662
  %vm1673 = vcmp.eq.f32.partialorder %v1672, 8.507059e+37
  %v1674 = vand.u32 %v1662, 2147483648
  %v1675 = vor.u32 1.1754944e-38, %v1674
  %v1676 = vsel %vm1673, %v1675, %v1671
  %v1677 = vmul.f32 %v1652, %v1676
  %v1678 = vmin.f32 %v1677, 1.0
  %v1679 = vmax.f32 %v1678, -1.0
  %v1680 = vmul.f32 %v1063, %v1063
  %v1681 = vmin.f32 16.0, %v1680
  %v1682 = vmul.f32 %v1681, 2.1237322e-06
  %v1683 = vadd.f32 %v1682, 0.00028619796
  %v1684 = vmul.f32 %v1681, %v1683
  %v1685 = vadd.f32 %v1684, 0.0036580483
  %v1686 = vmul.f32 %v1681, %v1685
  %v1687 = vadd.f32 %v1686, 0.05243302
  %v1688 = vmul.f32 %v1681, %v1687
  %v1689 = vadd.f32 %v1688, 0.18741608
  %v1690 = vmul.f32 %v1681, %v1689
  %v1691 = vadd.f32 %v1690, 1.1283791
  %v1692 = vmul.f32 %v1063, %v1691
  %v1693 = vmul.f32 %v1681, 3.8918573e-05
  %v1694 = vadd.f32 %v1693, 0.001143296
  %v1695 = vmul.f32 %v1681, %v1694
  %v1696 = vadd.f32 %v1695, 0.014752088
  %v1697 = vmul.f32 %v1681, %v1696
  %v1698 = vadd.f32 %v1697, 0.112945676
  %v1699 = vmul.f32 %v1681, %v1698
  %v1700 = vadd.f32 %v1699, 0.4994258
  %v1701 = vmul.f32 %v1681, %v1700
  %v1702 = vadd.f32 %v1701, 1.0
  %v1703 = vrcp.pop %v1702
  %v1704 = vmul.f32 %v1702, %v1703
  %v1705 = vsub.f32 1.0, %v1704
  %v1706 = vmul.f32 %v1703, %v1705
  %v1707 = vadd.f32 %v1703, %v1706
  %vm1708 = vweird.f32 %v1702
  %vm1709 = vweird.f32 %v1703
  %vm1710 = vmor %vm1708, %vm1709
  %v1711 = vsel %vm1710, %v1703, %v1707
  %v1712 = vand.u32 2147483647, %v1702
  %vm1713 = vcmp.eq.f32.partialorder %v1712, 8.507059e+37
  %v1714 = vand.u32 %v1702, 2147483648
  %v1715 = vor.u32 1.1754944e-38, %v1714
  %v1716 = vsel %vm1713, %v1715, %v1711
  %v1717 = vmul.f32 %v1692, %v1716
  %v1718 = vmin.f32 %v1717, 1.0
  %v1719 = vmax.f32 %v1718, -1.0
  %v1720 = vmul.f32 %v1064, %v1064
  %v1721 = vmin.f32 16.0, %v1720
  %v1722 = vmul.f32 %v1721, 2.1237322e-06
  %v1723 = vadd.f32 %v1722, 0.00028619796
  %v1724 = vmul.f32 %v1721, %v1723
  %v1725 = vadd.f32 %v1724, 0.0036580483
  %v1726 = vmul.f32 %v1721, %v1725
  %v1727 = vadd.f32 %v1726, 0.05243302
  %v1728 = vmul.f32 %v1721, %v1727
  %v1729 = vadd.f32 %v1728, 0.18741608
  %v1730 = vmul.f32 %v1721, %v1729
  %v1731 = vadd.f32 %v1730, 1.1283791
  %v1732 = vmul.f32 %v1064, %v1731
  %v1733 = vmul.f32 %v1721, 3.8918573e-05
  %v1734 = vadd.f32 %v1733, 0.001143296
  %v1735 = vmul.f32 %v1721, %v1734
  %v1736 = vadd.f32 %v1735, 0.014752088
  %v1737 = vmul.f32 %v1721, %v1736
  %v1738 = vadd.f32 %v1737, 0.112945676
  %v1739 = vmul.f32 %v1721, %v1738
  %v1740 = vadd.f32 %v1739, 0.4994258
  %v1741 = vmul.f32 %v1721, %v1740
  %v1742 = vadd.f32 %v1741, 1.0
  %v1743 = vrcp.pop %v1742
  %v1744 = vmul.f32 %v1742, %v1743
  %v1745 = vsub.f32 1.0, %v1744
  %v1746 = vmul.f32 %v1743, %v1745
  %v1747 = vadd.f32 %v1743, %v1746
  %vm1748 = vweird.f32 %v1742
  %vm1749 = vweird.f32 %v1743
  %vm1750 = vmor %vm1748, %vm1749
  %v1751 = vsel %vm1750, %v1743, %v1747
  %v1752 = vand.u32 2147483647, %v1742
  %vm1753 = vcmp.eq.f32.partialorder %v1752, 8.507059e+37
  %v1754 = vand.u32 %v1742, 2147483648
  %v1755 = vor.u32 1.1754944e-38, %v1754
  %v1756 = vsel %vm1753, %v1755, %v1751
  %v1757 = vmul.f32 %v1732, %v1756
  %v1758 = vmin.f32 %v1757, 1.0
  %v1759 = vmax.f32 %v1758, -1.0
  %v1760 = vmul.f32 %v1065, %v1065
  %v1761 = vmin.f32 16.0, %v1760
  %v1762 = vmul.f32 %v1761, 2.1237322e-06
  %v1763 = vadd.f32 %v1762, 0.00028619796
  %v1764 = vmul.f32 %v1761, %v1763
  %v1765 = vadd.f32 %v1764, 0.0036580483
  %v1766 = vmul.f32 %v1761, %v1765
  %v1767 = vadd.f32 %v1766, 0.05243302
  %v1768 = vmul.f32 %v1761, %v1767
  %v1769 = vadd.f32 %v1768, 0.18741608
  %v1770 = vmul.f32 %v1761, %v1769
  %v1771 = vadd.f32 %v1770, 1.1283791
  %v1772 = vmul.f32 %v1065, %v1771
  %v1773 = vmul.f32 %v1761, 3.8918573e-05
  %v1774 = vadd.f32 %v1773, 0.001143296
  %v1775 = vmul.f32 %v1761, %v1774
  %v1776 = vadd.f32 %v1775, 0.014752088
  %v1777 = vmul.f32 %v1761, %v1776
  %v1778 = vadd.f32 %v1777, 0.112945676
  %v1779 = vmul.f32 %v1761, %v1778
  %v1780 = vadd.f32 %v1779, 0.4994258
  %v1781 = vmul.f32 %v1761, %v1780
  %v1782 = vadd.f32 %v1781, 1.0
  %v1783 = vrcp.pop %v1782
  %v1784 = vmul.f32 %v1782, %v1783
  %v1785 = vsub.f32 1.0, %v1784
  %v1786 = vmul.f32 %v1783, %v1785
  %v1787 = vadd.f32 %v1783, %v1786
  %vm1788 = vweird.f32 %v1782
  %vm1789 = vweird.f32 %v1783
  %vm1790 = vmor %vm1788, %vm1789
  %v1791 = vsel %vm1790, %v1783, %v1787
  %v1792 = vand.u32 2147483647, %v1782
  %vm1793 = vcmp.eq.f32.partialorder %v1792, 8.507059e+37
  %v1794 = vand.u32 %v1782, 2147483648
  %v1795 = vor.u32 1.1754944e-38, %v1794
  %v1796 = vsel %vm1793, %v1795, %v1791
  %v1797 = vmul.f32 %v1772, %v1796
  %v1798 = vmin.f32 %v1797, 1.0
  %v1799 = vmax.f32 %v1798, -1.0
  %v1800 = vmul.f32 %v1066, %v1066
  %v1801 = vmin.f32 16.0, %v1800
  %v1802 = vmul.f32 %v1801, 2.1237322e-06
  %v1803 = vadd.f32 %v1802, 0.00028619796
  %v1804 = vmul.f32 %v1801, %v1803
  %v1805 = vadd.f32 %v1804, 0.0036580483
  %v1806 = vmul.f32 %v1801, %v1805
  %v1807 = vadd.f32 %v1806, 0.05243302
  %v1808 = vmul.f32 %v1801, %v1807
  %v1809 = vadd.f32 %v1808, 0.18741608
  %v1810 = vmul.f32 %v1801, %v1809
  %v1811 = vadd.f32 %v1810, 1.1283791
  %v1812 = vmul.f32 %v1066, %v1811
  %v1813 = vmul.f32 %v1801, 3.8918573e-05
  %v1814 = vadd.f32 %v1813, 0.001143296
  %v1815 = vmul.f32 %v1801, %v1814
  %v1816 = vadd.f32 %v1815, 0.014752088
  %v1817 = vmul.f32 %v1801, %v1816
  %v1818 = vadd.f32 %v1817, 0.112945676
  %v1819 = vmul.f32 %v1801, %v1818
  %v1820 = vadd.f32 %v1819, 0.4994258
  %v1821 = vmul.f32 %v1801, %v1820
  %v1822 = vadd.f32 %v1821, 1.0
  %v1823 = vrcp.pop %v1822
  %v1824 = vmul.f32 %v1822, %v1823
  %v1825 = vsub.f32 1.0, %v1824
  %v1826 = vmul.f32 %v1823, %v1825
  %v1827 = vadd.f32 %v1823, %v1826
  %vm1828 = vweird.f32 %v1822
  %vm1829 = vweird.f32 %v1823
  %vm1830 = vmor %vm1828, %vm1829
  %v1831 = vsel %vm1830, %v1823, %v1827
  %v1832 = vand.u32 2147483647, %v1822
  %vm1833 = vcmp.eq.f32.partialorder %v1832, 8.507059e+37
  %v1834 = vand.u32 %v1822, 2147483648
  %v1835 = vor.u32 1.1754944e-38, %v1834
  %v1836 = vsel %vm1833, %v1835, %v1831
  %v1837 = vmul.f32 %v1812, %v1836
  %v1838 = vmin.f32 %v1837, 1.0
  %v1839 = vmax.f32 %v1838, -1.0
  %v1840 = vmul.f32 %v1067, %v1067
  %v1841 = vmin.f32 16.0, %v1840
  %v1842 = vmul.f32 %v1841, 2.1237322e-06
  %v1843 = vadd.f32 %v1842, 0.00028619796
  %v1844 = vmul.f32 %v1841, %v1843
  %v1845 = vadd.f32 %v1844, 0.0036580483
  %v1846 = vmul.f32 %v1841, %v1845
  %v1847 = vadd.f32 %v1846, 0.05243302
  %v1848 = vmul.f32 %v1841, %v1847
  %v1849 = vadd.f32 %v1848, 0.18741608
  %v1850 = vmul.f32 %v1841, %v1849
  %v1851 = vadd.f32 %v1850, 1.1283791
  %v1852 = vmul.f32 %v1067, %v1851
  %v1853 = vmul.f32 %v1841, 3.8918573e-05
  %v1854 = vadd.f32 %v1853, 0.001143296
  %v1855 = vmul.f32 %v1841, %v1854
  %v1856 = vadd.f32 %v1855, 0.014752088
  %v1857 = vmul.f32 %v1841, %v1856
  %v1858 = vadd.f32 %v1857, 0.112945676
  %v1859 = vmul.f32 %v1841, %v1858
  %v1860 = vadd.f32 %v1859, 0.4994258
  %v1861 = vmul.f32 %v1841, %v1860
  %v1862 = vadd.f32 %v1861, 1.0
  %v1863 = vrcp.pop %v1862
  %v1864 = vmul.f32 %v1862, %v1863
  %v1865 = vsub.f32 1.0, %v1864
  %v1866 = vmul.f32 %v1863, %v1865
  %v1867 = vadd.f32 %v1863, %v1866
  %vm1868 = vweird.f32 %v1862
  %vm1869 = vweird.f32 %v1863
  %vm1870 = vmor %vm1868, %vm1869
  %v1871 = vsel %vm1870, %v1863, %v1867
  %v1872 = vand.u32 2147483647, %v1862
  %vm1873 = vcmp.eq.f32.partialorder %v1872, 8.507059e+37
  %v1874 = vand.u32 %v1862, 2147483648
  %v1875 = vor.u32 1.1754944e-38, %v1874
  %v1876 = vsel %vm1873, %v1875, %v1871
  %v1877 = vmul.f32 %v1852, %v1876
  %v1878 = vmin.f32 %v1877, 1.0
  %v1879 = vmax.f32 %v1878, -1.0
  %v1880 = vmul.f32 %v1068, %v1068
  %v1881 = vmin.f32 16.0, %v1880
  %v1882 = vmul.f32 %v1881, 2.1237322e-06
  %v1883 = vadd.f32 %v1882, 0.00028619796
  %v1884 = vmul.f32 %v1881, %v1883
  %v1885 = vadd.f32 %v1884, 0.0036580483
  %v1886 = vmul.f32 %v1881, %v1885
  %v1887 = vadd.f32 %v1886, 0.05243302
  %v1888 = vmul.f32 %v1881, %v1887
  %v1889 = vadd.f32 %v1888, 0.18741608
  %v1890 = vmul.f32 %v1881, %v1889
  %v1891 = vadd.f32 %v1890, 1.1283791
  %v1892 = vmul.f32 %v1068, %v1891
  %v1893 = vmul.f32 %v1881, 3.8918573e-05
  %v1894 = vadd.f32 %v1893, 0.001143296
  %v1895 = vmul.f32 %v1881, %v1894
  %v1896 = vadd.f32 %v1895, 0.014752088
  %v1897 = vmul.f32 %v1881, %v1896
  %v1898 = vadd.f32 %v1897, 0.112945676
  %v1899 = vmul.f32 %v1881, %v1898
  %v1900 = vadd.f32 %v1899, 0.4994258
  %v1901 = vmul.f32 %v1881, %v1900
  %v1902 = vadd.f32 %v1901, 1.0
  %v1903 = vrcp.pop %v1902
  %v1904 = vmul.f32 %v1902, %v1903
  %v1905 = vsub.f32 1.0, %v1904
  %v1906 = vmul.f32 %v1903, %v1905
  %v1907 = vadd.f32 %v1903, %v1906
  %vm1908 = vweird.f32 %v1902
  %vm1909 = vweird.f32 %v1903
  %vm1910 = vmor %vm1908, %vm1909
  %v1911 = vsel %vm1910, %v1903, %v1907
  %v1912 = vand.u32 2147483647, %v1902
  %vm1913 = vcmp.eq.f32.partialorder %v1912, 8.507059e+37
  %v1914 = vand.u32 %v1902, 2147483648
  %v1915 = vor.u32 1.1754944e-38, %v1914
  %v1916 = vsel %vm1913, %v1915, %v1911
  %v1917 = vmul.f32 %v1892, %v1916
  %v1918 = vmin.f32 %v1917, 1.0
  %v1919 = vmax.f32 %v1918, -1.0
  %v1920 = vmul.f32 %v1069, %v1069
  %v1921 = vmin.f32 16.0, %v1920
  %v1922 = vmul.f32 %v1921, 2.1237322e-06
  %v1923 = vadd.f32 %v1922, 0.00028619796
  %v1924 = vmul.f32 %v1921, %v1923
  %v1925 = vadd.f32 %v1924, 0.0036580483
  %v1926 = vmul.f32 %v1921, %v1925
  %v1927 = vadd.f32 %v1926, 0.05243302
  %v1928 = vmul.f32 %v1921, %v1927
  %v1929 = vadd.f32 %v1928, 0.18741608
  %v1930 = vmul.f32 %v1921, %v1929
  %v1931 = vadd.f32 %v1930, 1.1283791
  %v1932 = vmul.f32 %v1069, %v1931
  %v1933 = vmul.f32 %v1921, 3.8918573e-05
  %v1934 = vadd.f32 %v1933, 0.001143296
  %v1935 = vmul.f32 %v1921, %v1934
  %v1936 = vadd.f32 %v1935, 0.014752088
  %v1937 = vmul.f32 %v1921, %v1936
  %v1938 = vadd.f32 %v1937, 0.112945676
  %v1939 = vmul.f32 %v1921, %v1938
  %v1940 = vadd.f32 %v1939, 0.4994258
  %v1941 = vmul.f32 %v1921, %v1940
  %v1942 = vadd.f32 %v1941, 1.0
  %v1943 = vrcp.pop %v1942
  %v1944 = vmul.f32 %v1942, %v1943
  %v1945 = vsub.f32 1.0, %v1944
  %v1946 = vmul.f32 %v1943, %v1945
  %v1947 = vadd.f32 %v1943, %v1946
  %vm1948 = vweird.f32 %v1942
  %vm1949 = vweird.f32 %v1943
  %vm1950 = vmor %vm1948, %vm1949
  %v1951 = vsel %vm1950, %v1943, %v1947
  %v1952 = vand.u32 2147483647, %v1942
  %vm1953 = vcmp.eq.f32.partialorder %v1952, 8.507059e+37
  %v1954 = vand.u32 %v1942, 2147483648
  %v1955 = vor.u32 1.1754944e-38, %v1954
  %v1956 = vsel %vm1953, %v1955, %v1951
  %v1957 = vmul.f32 %v1932, %v1956
  %v1958 = vmin.f32 %v1957, 1.0
  %v1959 = vmax.f32 %v1958, -1.0
  %v1960 = vmul.f32 %v1070, %v1070
  %v1961 = vmin.f32 16.0, %v1960
  %v1962 = vmul.f32 %v1961, 2.1237322e-06
  %v1963 = vadd.f32 %v1962, 0.00028619796
  %v1964 = vmul.f32 %v1961, %v1963
  %v1965 = vadd.f32 %v1964, 0.0036580483
  %v1966 = vmul.f32 %v1961, %v1965
  %v1967 = vadd.f32 %v1966, 0.05243302
  %v1968 = vmul.f32 %v1961, %v1967
  %v1969 = vadd.f32 %v1968, 0.18741608
  %v1970 = vmul.f32 %v1961, %v1969
  %v1971 = vadd.f32 %v1970, 1.1283791
  %v1972 = vmul.f32 %v1070, %v1971
  %v1973 = vmul.f32 %v1961, 3.8918573e-05
  %v1974 = vadd.f32 %v1973, 0.001143296
  %v1975 = vmul.f32 %v1961, %v1974
  %v1976 = vadd.f32 %v1975, 0.014752088
  %v1977 = vmul.f32 %v1961, %v1976
  %v1978 = vadd.f32 %v1977, 0.112945676
  %v1979 = vmul.f32 %v1961, %v1978
  %v1980 = vadd.f32 %v1979, 0.4994258
  %v1981 = vmul.f32 %v1961, %v1980
  %v1982 = vadd.f32 %v1981, 1.0
  %v1983 = vrcp.pop %v1982
  %v1984 = vmul.f32 %v1982, %v1983
  %v1985 = vsub.f32 1.0, %v1984
  %v1986 = vmul.f32 %v1983, %v1985
  %v1987 = vadd.f32 %v1983, %v1986
  %vm1988 = vweird.f32 %v1982
  %vm1989 = vweird.f32 %v1983
  %vm1990 = vmor %vm1988, %vm1989
  %v1991 = vsel %vm1990, %v1983, %v1987
  %v1992 = vand.u32 2147483647, %v1982
  %vm1993 = vcmp.eq.f32.partialorder %v1992, 8.507059e+37
  %v1994 = vand.u32 %v1982, 2147483648
  %v1995 = vor.u32 1.1754944e-38, %v1994
  %v1996 = vsel %vm1993, %v1995, %v1991
  %v1997 = vmul.f32 %v1972, %v1996
  %v1998 = vmin.f32 %v1997, 1.0
  %v1999 = vmax.f32 %v1998, -1.0
  %v2000 = vmul.f32 %v1071, %v1071
  %v2001 = vmin.f32 16.0, %v2000
  %v2002 = vmul.f32 %v2001, 2.1237322e-06
  %v2003 = vadd.f32 %v2002, 0.00028619796
  %v2004 = vmul.f32 %v2001, %v2003
  %v2005 = vadd.f32 %v2004, 0.0036580483
  %v2006 = vmul.f32 %v2001, %v2005
  %v2007 = vadd.f32 %v2006, 0.05243302
  %v2008 = vmul.f32 %v2001, %v2007
  %v2009 = vadd.f32 %v2008, 0.18741608
  %v2010 = vmul.f32 %v2001, %v2009
  %v2011 = vadd.f32 %v2010, 1.1283791
  %v2012 = vmul.f32 %v1071, %v2011
  %v2013 = vmul.f32 %v2001, 3.8918573e-05
  %v2014 = vadd.f32 %v2013, 0.001143296
  %v2015 = vmul.f32 %v2001, %v2014
  %v2016 = vadd.f32 %v2015, 0.014752088
  %v2017 = vmul.f32 %v2001, %v2016
  %v2018 = vadd.f32 %v2017, 0.112945676
  %v2019 = vmul.f32 %v2001, %v2018
  %v2020 = vadd.f32 %v2019, 0.4994258
  %v2021 = vmul.f32 %v2001, %v2020
  %v2022 = vadd.f32 %v2021, 1.0
  %v2023 = vrcp.pop %v2022
  %v2024 = vmul.f32 %v2022, %v2023
  %v2025 = vsub.f32 1.0, %v2024
  %v2026 = vmul.f32 %v2023, %v2025
  %v2027 = vadd.f32 %v2023, %v2026
  %vm2028 = vweird.f32 %v2022
  %vm2029 = vweird.f32 %v2023
  %vm2030 = vmor %vm2028, %vm2029
  %v2031 = vsel %vm2030, %v2023, %v2027
  %v2032 = vand.u32 2147483647, %v2022
  %vm2033 = vcmp.eq.f32.partialorder %v2032, 8.507059e+37
  %v2034 = vand.u32 %v2022, 2147483648
  %v2035 = vor.u32 1.1754944e-38, %v2034
  %v2036 = vsel %vm2033, %v2035, %v2031
  %v2037 = vmul.f32 %v2012, %v2036
  %v2038 = vmin.f32 %v2037, 1.0
  %v2039 = vmax.f32 %v2038, -1.0
  %v2040 = vmul.f32 %v1072, %v1072
  %v2041 = vmin.f32 16.0, %v2040
  %v2042 = vmul.f32 %v2041, 2.1237322e-06
  %v2043 = vadd.f32 %v2042, 0.00028619796
  %v2044 = vmul.f32 %v2041, %v2043
  %v2045 = vadd.f32 %v2044, 0.0036580483
  %v2046 = vmul.f32 %v2041, %v2045
  %v2047 = vadd.f32 %v2046, 0.05243302
  %v2048 = vmul.f32 %v2041, %v2047
  %v2049 = vadd.f32 %v2048, 0.18741608
  %v2050 = vmul.f32 %v2041, %v2049
  %v2051 = vadd.f32 %v2050, 1.1283791
  %v2052 = vmul.f32 %v1072, %v2051
  %v2053 = vmul.f32 %v2041, 3.8918573e-05
  %v2054 = vadd.f32 %v2053, 0.001143296
  %v2055 = vmul.f32 %v2041, %v2054
  %v2056 = vadd.f32 %v2055, 0.014752088
  %v2057 = vmul.f32 %v2041, %v2056
  %v2058 = vadd.f32 %v2057, 0.112945676
  %v2059 = vmul.f32 %v2041, %v2058
  %v2060 = vadd.f32 %v2059, 0.4994258
  %v2061 = vmul.f32 %v2041, %v2060
  %v2062 = vadd.f32 %v2061, 1.0
  %v2063 = vrcp.pop %v2062
  %v2064 = vmul.f32 %v2062, %v2063
  %v2065 = vsub.f32 1.0, %v2064
  %v2066 = vmul.f32 %v2063, %v2065
  %v2067 = vadd.f32 %v2063, %v2066
  %vm2068 = vweird.f32 %v2062
  %vm2069 = vweird.f32 %v2063
  %vm2070 = vmor %vm2068, %vm2069
  %v2071 = vsel %vm2070, %v2063, %v2067
  %v2072 = vand.u32 2147483647, %v2062
  %vm2073 = vcmp.eq.f32.partialorder %v2072, 8.507059e+37
  %v2074 = vand.u32 %v2062, 2147483648
  %v2075 = vor.u32 1.1754944e-38, %v2074
  %v2076 = vsel %vm2073, %v2075, %v2071
  %v2077 = vmul.f32 %v2052, %v2076
  %v2078 = vmin.f32 %v2077, 1.0
  %v2079 = vmax.f32 %v2078, -1.0
  %v2080 = vmul.f32 %v1073, %v1073
  %v2081 = vmin.f32 16.0, %v2080
  %v2082 = vmul.f32 %v2081, 2.1237322e-06
  %v2083 = vadd.f32 %v2082, 0.00028619796
  %v2084 = vmul.f32 %v2081, %v2083
  %v2085 = vadd.f32 %v2084, 0.0036580483
  %v2086 = vmul.f32 %v2081, %v2085
  %v2087 = vadd.f32 %v2086, 0.05243302
  %v2088 = vmul.f32 %v2081, %v2087
  %v2089 = vadd.f32 %v2088, 0.18741608
  %v2090 = vmul.f32 %v2081, %v2089
  %v2091 = vadd.f32 %v2090, 1.1283791
  %v2092 = vmul.f32 %v1073, %v2091
  %v2093 = vmul.f32 %v2081, 3.8918573e-05
  %v2094 = vadd.f32 %v2093, 0.001143296
  %v2095 = vmul.f32 %v2081, %v2094
  %v2096 = vadd.f32 %v2095, 0.014752088
  %v2097 = vmul.f32 %v2081, %v2096
  %v2098 = vadd.f32 %v2097, 0.112945676
  %v2099 = vmul.f32 %v2081, %v2098
  %v2100 = vadd.f32 %v2099, 0.4994258
  %v2101 = vmul.f32 %v2081, %v2100
  %v2102 = vadd.f32 %v2101, 1.0
  %v2103 = vrcp.pop %v2102
  %v2104 = vmul.f32 %v2102, %v2103
  %v2105 = vsub.f32 1.0, %v2104
  %v2106 = vmul.f32 %v2103, %v2105
  %v2107 = vadd.f32 %v2103, %v2106
  %vm2108 = vweird.f32 %v2102
  %vm2109 = vweird.f32 %v2103
  %vm2110 = vmor %vm2108, %vm2109
  %v2111 = vsel %vm2110, %v2103, %v2107
  %v2112 = vand.u32 2147483647, %v2102
  %vm2113 = vcmp.eq.f32.partialorder %v2112, 8.507059e+37
  %v2114 = vand.u32 %v2102, 2147483648
  %v2115 = vor.u32 1.1754944e-38, %v2114
  %v2116 = vsel %vm2113, %v2115, %v2111
  %v2117 = vmul.f32 %v2092, %v2116
  %v2118 = vmin.f32 %v2117, 1.0
  %v2119 = vmax.f32 %v2118, -1.0
  %v2120 = vmul.f32 %v1074, %v1074
  %v2121 = vmin.f32 16.0, %v2120
  %v2122 = vmul.f32 %v2121, 2.1237322e-06
  %v2123 = vadd.f32 %v2122, 0.00028619796
  %v2124 = vmul.f32 %v2121, %v2123
  %v2125 = vadd.f32 %v2124, 0.0036580483
  %v2126 = vmul.f32 %v2121, %v2125
  %v2127 = vadd.f32 %v2126, 0.05243302
  %v2128 = vmul.f32 %v2121, %v2127
  %v2129 = vadd.f32 %v2128, 0.18741608
  %v2130 = vmul.f32 %v2121, %v2129
  %v2131 = vadd.f32 %v2130, 1.1283791
  %v2132 = vmul.f32 %v1074, %v2131
  %v2133 = vmul.f32 %v2121, 3.8918573e-05
  %v2134 = vadd.f32 %v2133, 0.001143296
  %v2135 = vmul.f32 %v2121, %v2134
  %v2136 = vadd.f32 %v2135, 0.014752088
  %v2137 = vmul.f32 %v2121, %v2136
  %v2138 = vadd.f32 %v2137, 0.112945676
  %v2139 = vmul.f32 %v2121, %v2138
  %v2140 = vadd.f32 %v2139, 0.4994258
  %v2141 = vmul.f32 %v2121, %v2140
  %v2142 = vadd.f32 %v2141, 1.0
  %v2143 = vrcp.pop %v2142
  %v2144 = vmul.f32 %v2142, %v2143
  %v2145 = vsub.f32 1.0, %v2144
  %v2146 = vmul.f32 %v2143, %v2145
  %v2147 = vadd.f32 %v2143, %v2146
  %vm2148 = vweird.f32 %v2142
  %vm2149 = vweird.f32 %v2143
  %vm2150 = vmor %vm2148, %vm2149
  %v2151 = vsel %vm2150, %v2143, %v2147
  %v2152 = vand.u32 2147483647, %v2142
  %vm2153 = vcmp.eq.f32.partialorder %v2152, 8.507059e+37
  %v2154 = vand.u32 %v2142, 2147483648
  %v2155 = vor.u32 1.1754944e-38, %v2154
  %v2156 = vsel %vm2153, %v2155, %v2151
  %v2157 = vmul.f32 %v2132, %v2156
  %v2158 = vmin.f32 %v2157, 1.0
  %v2159 = vmax.f32 %v2158, -1.0
  %v2160 = vmul.f32 %v1075, %v1075
  %v2161 = vmin.f32 16.0, %v2160
  %v2162 = vmul.f32 %v2161, 2.1237322e-06
  %v2163 = vadd.f32 %v2162, 0.00028619796
  %v2164 = vmul.f32 %v2161, %v2163
  %v2165 = vadd.f32 %v2164, 0.0036580483
  %v2166 = vmul.f32 %v2161, %v2165
  %v2167 = vadd.f32 %v2166, 0.05243302
  %v2168 = vmul.f32 %v2161, %v2167
  %v2169 = vadd.f32 %v2168, 0.18741608
  %v2170 = vmul.f32 %v2161, %v2169
  %v2171 = vadd.f32 %v2170, 1.1283791
  %v2172 = vmul.f32 %v1075, %v2171
  %v2173 = vmul.f32 %v2161, 3.8918573e-05
  %v2174 = vadd.f32 %v2173, 0.001143296
  %v2175 = vmul.f32 %v2161, %v2174
  %v2176 = vadd.f32 %v2175, 0.014752088
  %v2177 = vmul.f32 %v2161, %v2176
  %v2178 = vadd.f32 %v2177, 0.112945676
  %v2179 = vmul.f32 %v2161, %v2178
  %v2180 = vadd.f32 %v2179, 0.4994258
  %v2181 = vmul.f32 %v2161, %v2180
  %v2182 = vadd.f32 %v2181, 1.0
  %v2183 = vrcp.pop %v2182
  %v2184 = vmul.f32 %v2182, %v2183
  %v2185 = vsub.f32 1.0, %v2184
  %v2186 = vmul.f32 %v2183, %v2185
  %v2187 = vadd.f32 %v2183, %v2186
  %vm2188 = vweird.f32 %v2182
  %vm2189 = vweird.f32 %v2183
  %vm2190 = vmor %vm2188, %vm2189
  %v2191 = vsel %vm2190, %v2183, %v2187
  %v2192 = vand.u32 2147483647, %v2182
  %vm2193 = vcmp.eq.f32.partialorder %v2192, 8.507059e+37
  %v2194 = vand.u32 %v2182, 2147483648
  %v2195 = vor.u32 1.1754944e-38, %v2194
  %v2196 = vsel %vm2193, %v2195, %v2191
  %v2197 = vmul.f32 %v2172, %v2196
  %v2198 = vmin.f32 %v2197, 1.0
  %v2199 = vmax.f32 %v2198, -1.0
  %v2200 = vmul.f32 %v1076, %v1076
  %v2201 = vmin.f32 16.0, %v2200
  %v2202 = vmul.f32 %v2201, 2.1237322e-06
  %v2203 = vadd.f32 %v2202, 0.00028619796
  %v2204 = vmul.f32 %v2201, %v2203
  %v2205 = vadd.f32 %v2204, 0.0036580483
  %v2206 = vmul.f32 %v2201, %v2205
  %v2207 = vadd.f32 %v2206, 0.05243302
  %v2208 = vmul.f32 %v2201, %v2207
  %v2209 = vadd.f32 %v2208, 0.18741608
  %v2210 = vmul.f32 %v2201, %v2209
  %v2211 = vadd.f32 %v2210, 1.1283791
  %v2212 = vmul.f32 %v1076, %v2211
  %v2213 = vmul.f32 %v2201, 3.8918573e-05
  %v2214 = vadd.f32 %v2213, 0.001143296
  %v2215 = vmul.f32 %v2201, %v2214
  %v2216 = vadd.f32 %v2215, 0.014752088
  %v2217 = vmul.f32 %v2201, %v2216
  %v2218 = vadd.f32 %v2217, 0.112945676
  %v2219 = vmul.f32 %v2201, %v2218
  %v2220 = vadd.f32 %v2219, 0.4994258
  %v2221 = vmul.f32 %v2201, %v2220
  %v2222 = vadd.f32 %v2221, 1.0
  %v2223 = vrcp.pop %v2222
  %v2224 = vmul.f32 %v2222, %v2223
  %v2225 = vsub.f32 1.0, %v2224
  %v2226 = vmul.f32 %v2223, %v2225
  %v2227 = vadd.f32 %v2223, %v2226
  %vm2228 = vweird.f32 %v2222
  %vm2229 = vweird.f32 %v2223
  %vm2230 = vmor %vm2228, %vm2229
  %v2231 = vsel %vm2230, %v2223, %v2227
  %v2232 = vand.u32 2147483647, %v2222
  %vm2233 = vcmp.eq.f32.partialorder %v2232, 8.507059e+37
  %v2234 = vand.u32 %v2222, 2147483648
  %v2235 = vor.u32 1.1754944e-38, %v2234
  %v2236 = vsel %vm2233, %v2235, %v2231
  %v2237 = vmul.f32 %v2212, %v2236
  %v2238 = vmin.f32 %v2237, 1.0
  %v2239 = vmax.f32 %v2238, -1.0
  %v2240 = vmul.f32 %v1077, %v1077
  %v2241 = vmin.f32 16.0, %v2240
  %v2242 = vmul.f32 %v2241, 2.1237322e-06
  %v2243 = vadd.f32 %v2242, 0.00028619796
  %v2244 = vmul.f32 %v2241, %v2243
  %v2245 = vadd.f32 %v2244, 0.0036580483
  %v2246 = vmul.f32 %v2241, %v2245
  %v2247 = vadd.f32 %v2246, 0.05243302
  %v2248 = vmul.f32 %v2241, %v2247
  %v2249 = vadd.f32 %v2248, 0.18741608
  %v2250 = vmul.f32 %v2241, %v2249
  %v2251 = vadd.f32 %v2250, 1.1283791
  %v2252 = vmul.f32 %v1077, %v2251
  %v2253 = vmul.f32 %v2241, 3.8918573e-05
  %v2254 = vadd.f32 %v2253, 0.001143296
  %v2255 = vmul.f32 %v2241, %v2254
  %v2256 = vadd.f32 %v2255, 0.014752088
  %v2257 = vmul.f32 %v2241, %v2256
  %v2258 = vadd.f32 %v2257, 0.112945676
  %v2259 = vmul.f32 %v2241, %v2258
  %v2260 = vadd.f32 %v2259, 0.4994258
  %v2261 = vmul.f32 %v2241, %v2260
  %v2262 = vadd.f32 %v2261, 1.0
  %v2263 = vrcp.pop %v2262
  %v2264 = vmul.f32 %v2262, %v2263
  %v2265 = vsub.f32 1.0, %v2264
  %v2266 = vmul.f32 %v2263, %v2265
  %v2267 = vadd.f32 %v2263, %v2266
  %vm2268 = vweird.f32 %v2262
  %vm2269 = vweird.f32 %v2263
  %vm2270 = vmor %vm2268, %vm2269
  %v2271 = vsel %vm2270, %v2263, %v2267
  %v2272 = vand.u32 2147483647, %v2262
  %vm2273 = vcmp.eq.f32.partialorder %v2272, 8.507059e+37
  %v2274 = vand.u32 %v2262, 2147483648
  %v2275 = vor.u32 1.1754944e-38, %v2274
  %v2276 = vsel %vm2273, %v2275, %v2271
  %v2277 = vmul.f32 %v2252, %v2276
  %v2278 = vmin.f32 %v2277, 1.0
  %v2279 = vmax.f32 %v2278, -1.0
  %v2280 = vmul.f32 %v1078, %v1078
  %v2281 = vmin.f32 16.0, %v2280
  %v2282 = vmul.f32 %v2281, 2.1237322e-06
  %v2283 = vadd.f32 %v2282, 0.00028619796
  %v2284 = vmul.f32 %v2281, %v2283
  %v2285 = vadd.f32 %v2284, 0.0036580483
  %v2286 = vmul.f32 %v2281, %v2285
  %v2287 = vadd.f32 %v2286, 0.05243302
  %v2288 = vmul.f32 %v2281, %v2287
  %v2289 = vadd.f32 %v2288, 0.18741608
  %v2290 = vmul.f32 %v2281, %v2289
  %v2291 = vadd.f32 %v2290, 1.1283791
  %v2292 = vmul.f32 %v1078, %v2291
  %v2293 = vmul.f32 %v2281, 3.8918573e-05
  %v2294 = vadd.f32 %v2293, 0.001143296
  %v2295 = vmul.f32 %v2281, %v2294
  %v2296 = vadd.f32 %v2295, 0.014752088
  %v2297 = vmul.f32 %v2281, %v2296
  %v2298 = vadd.f32 %v2297, 0.112945676
  %v2299 = vmul.f32 %v2281, %v2298
  %v2300 = vadd.f32 %v2299, 0.4994258
  %v2301 = vmul.f32 %v2281, %v2300
  %v2302 = vadd.f32 %v2301, 1.0
  %v2303 = vrcp.pop %v2302
  %v2304 = vmul.f32 %v2302, %v2303
  %v2305 = vsub.f32 1.0, %v2304
  %v2306 = vmul.f32 %v2303, %v2305
  %v2307 = vadd.f32 %v2303, %v2306
  %vm2308 = vweird.f32 %v2302
  %vm2309 = vweird.f32 %v2303
  %vm2310 = vmor %vm2308, %vm2309
  %v2311 = vsel %vm2310, %v2303, %v2307
  %v2312 = vand.u32 2147483647, %v2302
  %vm2313 = vcmp.eq.f32.partialorder %v2312, 8.507059e+37
  %v2314 = vand.u32 %v2302, 2147483648
  %v2315 = vor.u32 1.1754944e-38, %v2314
  %v2316 = vsel %vm2313, %v2315, %v2311
  %v2317 = vmul.f32 %v2292, %v2316
  %v2318 = vmin.f32 %v2317, 1.0
  %v2319 = vmax.f32 %v2318, -1.0
  %v2320 = vmul.f32 %v1079, %v1079
  %v2321 = vmin.f32 16.0, %v2320
  %v2322 = vmul.f32 %v2321, 2.1237322e-06
  %v2323 = vadd.f32 %v2322, 0.00028619796
  %v2324 = vmul.f32 %v2321, %v2323
  %v2325 = vadd.f32 %v2324, 0.0036580483
  %v2326 = vmul.f32 %v2321, %v2325
  %v2327 = vadd.f32 %v2326, 0.05243302
  %v2328 = vmul.f32 %v2321, %v2327
  %v2329 = vadd.f32 %v2328, 0.18741608
  %v2330 = vmul.f32 %v2321, %v2329
  %v2331 = vadd.f32 %v2330, 1.1283791
  %v2332 = vmul.f32 %v1079, %v2331
  %v2333 = vmul.f32 %v2321, 3.8918573e-05
  %v2334 = vadd.f32 %v2333, 0.001143296
  %v2335 = vmul.f32 %v2321, %v2334
  %v2336 = vadd.f32 %v2335, 0.014752088
  %v2337 = vmul.f32 %v2321, %v2336
  %v2338 = vadd.f32 %v2337, 0.112945676
  %v2339 = vmul.f32 %v2321, %v2338
  %v2340 = vadd.f32 %v2339, 0.4994258
  %v2341 = vmul.f32 %v2321, %v2340
  %v2342 = vadd.f32 %v2341, 1.0
  %v2343 = vrcp.pop %v2342
  %v2344 = vmul.f32 %v2342, %v2343
  %v2345 = vsub.f32 1.0, %v2344
  %v2346 = vmul.f32 %v2343, %v2345
  %v2347 = vadd.f32 %v2343, %v2346
  %vm2348 = vweird.f32 %v2342
  %vm2349 = vweird.f32 %v2343
  %vm2350 = vmor %vm2348, %vm2349
  %v2351 = vsel %vm2350, %v2343, %v2347
  %v2352 = vand.u32 2147483647, %v2342
  %vm2353 = vcmp.eq.f32.partialorder %v2352, 8.507059e+37
  %v2354 = vand.u32 %v2342, 2147483648
  %v2355 = vor.u32 1.1754944e-38, %v2354
  %v2356 = vsel %vm2353, %v2355, %v2351
  %v2357 = vmul.f32 %v2332, %v2356
  %v2358 = vmin.f32 %v2357, 1.0
  %v2359 = vmax.f32 %v2358, -1.0
  %v2360 = vadd.f32 %v1119, 1.0
  %v2361 = vadd.f32 %v1159, 1.0
  %v2362 = vadd.f32 %v1199, 1.0
  %v2363 = vadd.f32 %v1239, 1.0
  %v2364 = vadd.f32 %v1279, 1.0
  %v2365 = vadd.f32 %v1319, 1.0
  %v2366 = vadd.f32 %v1359, 1.0
  %v2367 = vadd.f32 %v1399, 1.0
  %v2368 = vadd.f32 %v1439, 1.0
  %v2369 = vadd.f32 %v1479, 1.0
  %v2370 = vadd.f32 %v1519, 1.0
  %v2371 = vadd.f32 %v1559, 1.0
  %v2372 = vadd.f32 %v1599, 1.0
  %v2373 = vadd.f32 %v1639, 1.0
  %v2374 = vadd.f32 %v1679, 1.0
  %v2375 = vadd.f32 %v1719, 1.0
  %v2376 = vadd.f32 %v1759, 1.0
  %v2377 = vadd.f32 %v1799, 1.0
  %v2378 = vadd.f32 %v1839, 1.0
  %v2379 = vadd.f32 %v1879, 1.0
  %v2380 = vadd.f32 %v1919, 1.0
  %v2381 = vadd.f32 %v1959, 1.0
  %v2382 = vadd.f32 %v1999, 1.0
  %v2383 = vadd.f32 %v2039, 1.0
  %v2384 = vadd.f32 %v2079, 1.0
  %v2385 = vadd.f32 %v2119, 1.0
  %v2386 = vadd.f32 %v2159, 1.0
  %v2387 = vadd.f32 %v2199, 1.0
  %v2388 = vadd.f32 %v2239, 1.0
  %v2389 = vadd.f32 %v2279, 1.0
  %v2390 = vadd.f32 %v2319, 1.0
  %v2391 = vadd.f32 %v2359, 1.0
  %v2392 = vmul.f32 %v1016, %v2360
  %v2393 = vmul.f32 %v1017, %v2361
  %v2394 = vmul.f32 %v1018, %v2362
  %v2395 = vmul.f32 %v1019, %v2363
  %v2396 = vmul.f32 %v1020, %v2364
  %v2397 = vmul.f32 %v1021, %v2365
  %v2398 = vmul.f32 %v1022, %v2366
  %v2399 = vmul.f32 %v1023, %v2367
  %v2400 = vmul.f32 %v1024, %v2368
  %v2401 = vmul.f32 %v1025, %v2369
  %v2402 = vmul.f32 %v1026, %v2370
  %v2403 = vmul.f32 %v1027, %v2371
  %v2404 = vmul.f32 %v1028, %v2372
  %v2405 = vmul.f32 %v1029, %v2373
  %v2406 = vmul.f32 %v1030, %v2374
  %v2407 = vmul.f32 %v1031, %v2375
  %v2408 = vmul.f32 %v1032, %v2376
  %v2409 = vmul.f32 %v1033, %v2377
  %v2410 = vmul.f32 %v1034, %v2378
  %v2411 = vmul.f32 %v1035, %v2379
  %v2412 = vmul.f32 %v1036, %v2380
  %v2413 = vmul.f32 %v1037, %v2381
  %v2414 = vmul.f32 %v1038, %v2382
  %v2415 = vmul.f32 %v1039, %v2383
  %v2416 = vmul.f32 %v1040, %v2384
  %v2417 = vmul.f32 %v1041, %v2385
  %v2418 = vmul.f32 %v1042, %v2386
  %v2419 = vmul.f32 %v1043, %v2387
  %v2420 = vmul.f32 %v1044, %v2388
  %v2421 = vmul.f32 %v1045, %v2389
  %v2422 = vmul.f32 %v1046, %v2390
  %v2423 = vmul.f32 %v1047, %v2391
  %v2424 = vpack.c.bf16 %v2393, %v2392
  %v2425 = vpack.c.bf16 %v2395, %v2394
  %v2426 = vpack.c.bf16 %v2397, %v2396
  %v2427 = vpack.c.bf16 %v2399, %v2398
  %v2428 = vpack.c.bf16 %v2401, %v2400
  %v2429 = vpack.c.bf16 %v2403, %v2402
  %v2430 = vpack.c.bf16 %v2405, %v2404
  %v2431 = vpack.c.bf16 %v2407, %v2406
  %v2432 = vpack.c.bf16 %v2409, %v2408
  %v2433 = vpack.c.bf16 %v2411, %v2410
  %v2434 = vpack.c.bf16 %v2413, %v2412
  %v2435 = vpack.c.bf16 %v2415, %v2414
  %v2436 = vpack.c.bf16 %v2417, %v2416
  %v2437 = vpack.c.bf16 %v2419, %v2418
  %v2438 = vpack.c.bf16 %v2421, %v2420
  %v2439 = vpack.c.bf16 %v2423, %v2422
  %v2440 = vld [vmem:[%s5] sm:$0xf]
  %v2441 = vld [vmem:[%s5 + $0x4] sm:$0xf]
  %v2442 = vld [vmem:[%s5 + $0x8] sm:$0xf]
  %v2443 = vld [vmem:[%s5 + $0xc] sm:$0xf]
  %v2444 = vld [vmem:[%s6] sm:$0x1]
  %v2446 = vperm.slane %v2444, 0
  %v2452 = vunpack.c.l.b16 %v2440
  %v2453 = vunpack.c.l.b16 %v2441
  %v2454 = vunpack.c.l.b16 %v2442
  %v2455 = vunpack.c.l.b16 %v2443
  %v2456 = vpack.c.b16 %v2453, %v2452
  %v2457 = vpack.c.b16 %v2455, %v2454
  %v2461 = vsel %vm59, %v2424, 0
  %v2464 = vsel %vm59, %v2425, 0
  %v2467 = vsel %vm59, %v2426, 0
  %v2470 = vsel %vm59, %v2427, 0
  %v2473 = vsel %vm59, %v2428, 0
  %v2476 = vsel %vm59, %v2429, 0
  %v2479 = vsel %vm59, %v2430, 0
  %v2482 = vsel %vm59, %v2431, 0
  %v2485 = vsel %vm59, %v2432, 0
  %v2488 = vsel %vm59, %v2433, 0
  %v2491 = vsel %vm59, %v2434, 0
  %v2494 = vsel %vm59, %v2435, 0
  %v2497 = vsel %vm59, %v2436, 0
  %v2500 = vsel %vm59, %v2437, 0
  %v2503 = vsel %vm59, %v2438, 0
  %v2506 = vsel %vm59, %v2439, 0
  %2508 = vmatpush.bf16.msra.mxu0 0
  %2509 = vmatpush.bf16.msra.mxu0 0
  %2510 = vmatpush.bf16.msra.mxu0 0
  %2511 = vmatpush.bf16.msra.mxu0 0
  %2512 = vmatpush.bf16.msra.mxu0 0
  %2513 = vmatpush.bf16.msra.mxu0 0
  %2514 = vmatpush.bf16.msra.mxu0 %v2457
  %2515 = vmatpush.bf16.msra.mxu0 %v2456
  %2516 = vmatmul.bf16.gmra.mxu0 %v2461
  %v2517 = vpop.f32.mrf.mxu0
  %v2518 = vadd.f32 %v2446, %v2517
  %v2519 = vpop.f32.mrf.mxu0
  %v2520 = vadd.f32 %v2446, %v2519
  %2521 = vmatmul.bf16.gmra.mxu0 %v2464
  %v2522 = vpop.f32.mrf.mxu0
  %v2523 = vadd.f32 %v2446, %v2522
  %v2524 = vpop.f32.mrf.mxu0
  %v2525 = vadd.f32 %v2446, %v2524
  %2526 = vmatmul.bf16.gmra.mxu0 %v2467
  %v2527 = vpop.f32.mrf.mxu0
  %v2528 = vadd.f32 %v2446, %v2527
  %v2529 = vpop.f32.mrf.mxu0
  %v2530 = vadd.f32 %v2446, %v2529
  %2531 = vmatmul.bf16.gmra.mxu0 %v2470
  %v2532 = vpop.f32.mrf.mxu0
  %v2533 = vadd.f32 %v2446, %v2532
  %v2534 = vpop.f32.mrf.mxu0
  %v2535 = vadd.f32 %v2446, %v2534
  %2536 = vmatmul.bf16.gmra.mxu0 %v2473
  %v2537 = vpop.f32.mrf.mxu0
  %v2538 = vadd.f32 %v2446, %v2537
  %v2539 = vpop.f32.mrf.mxu0
  %v2540 = vadd.f32 %v2446, %v2539
  %2541 = vmatmul.bf16.gmra.mxu0 %v2476
  %v2542 = vpop.f32.mrf.mxu0
  %v2543 = vadd.f32 %v2446, %v2542
  %v2544 = vpop.f32.mrf.mxu0
  %v2545 = vadd.f32 %v2446, %v2544
  %2546 = vmatmul.bf16.gmra.mxu0 %v2479
  %v2547 = vpop.f32.mrf.mxu0
  %v2548 = vadd.f32 %v2446, %v2547
  %v2549 = vpop.f32.mrf.mxu0
  %v2550 = vadd.f32 %v2446, %v2549
  %2551 = vmatmul.bf16.gmra.mxu0 %v2482
  %v2552 = vpop.f32.mrf.mxu0
  %v2553 = vadd.f32 %v2446, %v2552
  %v2554 = vpop.f32.mrf.mxu0
  %v2555 = vadd.f32 %v2446, %v2554
  %2556 = vmatmul.bf16.gmra.mxu0 %v2485
  %v2557 = vpop.f32.mrf.mxu0
  %v2558 = vadd.f32 %v2446, %v2557
  %v2559 = vpop.f32.mrf.mxu0
  %v2560 = vadd.f32 %v2446, %v2559
  %2561 = vmatmul.bf16.gmra.mxu0 %v2488
  %v2562 = vpop.f32.mrf.mxu0
  %v2563 = vadd.f32 %v2446, %v2562
  %v2564 = vpop.f32.mrf.mxu0
  %v2565 = vadd.f32 %v2446, %v2564
  %2566 = vmatmul.bf16.gmra.mxu0 %v2491
  %v2567 = vpop.f32.mrf.mxu0
  %v2568 = vadd.f32 %v2446, %v2567
  %v2569 = vpop.f32.mrf.mxu0
  %v2570 = vadd.f32 %v2446, %v2569
  %2571 = vmatmul.bf16.gmra.mxu0 %v2494
  %v2572 = vpop.f32.mrf.mxu0
  %v2573 = vadd.f32 %v2446, %v2572
  %v2574 = vpop.f32.mrf.mxu0
  %v2575 = vadd.f32 %v2446, %v2574
  %2576 = vmatmul.bf16.gmra.mxu0 %v2497
  %v2577 = vpop.f32.mrf.mxu0
  %v2578 = vadd.f32 %v2446, %v2577
  %v2579 = vpop.f32.mrf.mxu0
  %v2580 = vadd.f32 %v2446, %v2579
  %2581 = vmatmul.bf16.gmra.mxu0 %v2500
  %v2582 = vpop.f32.mrf.mxu0
  %v2583 = vadd.f32 %v2446, %v2582
  %v2584 = vpop.f32.mrf.mxu0
  %v2585 = vadd.f32 %v2446, %v2584
  %2586 = vmatmul.bf16.gmra.mxu0 %v2503
  %v2587 = vpop.f32.mrf.mxu0
  %v2588 = vadd.f32 %v2446, %v2587
  %v2589 = vpop.f32.mrf.mxu0
  %v2590 = vadd.f32 %v2446, %v2589
  %2591 = vmatmul.bf16.gmra.mxu0 %v2506
  %v2592 = vpop.f32.mrf.mxu0
  %v2593 = vadd.f32 %v2446, %v2592
  %v2594 = vpop.f32.mrf.mxu0
  %v2595 = vadd.f32 %v2446, %v2594
  %2596 = vdwg.mxu0
  %v2597 = vadd.f32 %v811, %v2518
  %v2598 = vadd.f32 %v812, %v2520
  %v2599 = vadd.f32 %v813, %v2523
  %v2600 = vadd.f32 %v814, %v2525
  %v2601 = vadd.f32 %v815, %v2528
  %v2602 = vadd.f32 %v816, %v2530
  %v2603 = vadd.f32 %v817, %v2533
  %v2604 = vadd.f32 %v818, %v2535
  %v2605 = vadd.f32 %v819, %v2538
  %v2606 = vadd.f32 %v820, %v2540
  %v2607 = vadd.f32 %v821, %v2543
  %v2608 = vadd.f32 %v822, %v2545
  %v2609 = vadd.f32 %v823, %v2548
  %v2610 = vadd.f32 %v824, %v2550
  %v2611 = vadd.f32 %v825, %v2553
  %v2612 = vadd.f32 %v826, %v2555
  %v2613 = vadd.f32 %v827, %v2558
  %v2614 = vadd.f32 %v828, %v2560
  %v2615 = vadd.f32 %v829, %v2563
  %v2616 = vadd.f32 %v830, %v2565
  %v2617 = vadd.f32 %v831, %v2568
  %v2618 = vadd.f32 %v832, %v2570
  %v2619 = vadd.f32 %v833, %v2573
  %v2620 = vadd.f32 %v834, %v2575
  %v2621 = vadd.f32 %v835, %v2578
  %v2622 = vadd.f32 %v836, %v2580
  %v2623 = vadd.f32 %v837, %v2583
  %v2624 = vadd.f32 %v838, %v2585
  %v2625 = vadd.f32 %v839, %v2588
  %v2626 = vadd.f32 %v840, %v2590
  %v2627 = vadd.f32 %v841, %v2593
  %v2628 = vadd.f32 %v842, %v2595
  %2629 = vst.msk [vmem:[%s7] sm:$0xff] %vm59, %v2597
  %2630 = vst.msk [vmem:[%s7 + $0x8] sm:$0xff] %vm59, %v2598
  %2631 = vst.msk [vmem:[%s7 + $0x10] sm:$0xff] %vm59, %v2599
  %2632 = vst.msk [vmem:[%s7 + $0x18] sm:$0xff] %vm59, %v2600
  %2633 = vst.msk [vmem:[%s7 + $0x20] sm:$0xff] %vm59, %v2601
  %2634 = vst.msk [vmem:[%s7 + $0x28] sm:$0xff] %vm59, %v2602
  %2635 = vst.msk [vmem:[%s7 + $0x30] sm:$0xff] %vm59, %v2603
  %2636 = vst.msk [vmem:[%s7 + $0x38] sm:$0xff] %vm59, %v2604
  %2637 = vst.msk [vmem:[%s7 + $0x40] sm:$0xff] %vm59, %v2605
  %2638 = vst.msk [vmem:[%s7 + $0x48] sm:$0xff] %vm59, %v2606
  %2639 = vst.msk [vmem:[%s7 + $0x50] sm:$0xff] %vm59, %v2607
  %2640 = vst.msk [vmem:[%s7 + $0x58] sm:$0xff] %vm59, %v2608
  %2641 = vst.msk [vmem:[%s7 + $0x60] sm:$0xff] %vm59, %v2609
  %2642 = vst.msk [vmem:[%s7 + $0x68] sm:$0xff] %vm59, %v2610
  %2643 = vst.msk [vmem:[%s7 + $0x70] sm:$0xff] %vm59, %v2611
  %2644 = vst.msk [vmem:[%s7 + $0x78] sm:$0xff] %vm59, %v2612
  %2645 = vst.msk [vmem:[%s7 + $0x80] sm:$0xff] %vm59, %v2613
  %2646 = vst.msk [vmem:[%s7 + $0x88] sm:$0xff] %vm59, %v2614
  %2647 = vst.msk [vmem:[%s7 + $0x90] sm:$0xff] %vm59, %v2615
  %2648 = vst.msk [vmem:[%s7 + $0x98] sm:$0xff] %vm59, %v2616
  %2649 = vst.msk [vmem:[%s7 + $0xa0] sm:$0xff] %vm59, %v2617
  %2650 = vst.msk [vmem:[%s7 + $0xa8] sm:$0xff] %vm59, %v2618
  %2651 = vst.msk [vmem:[%s7 + $0xb0] sm:$0xff] %vm59, %v2619
  %2652 = vst.msk [vmem:[%s7 + $0xb8] sm:$0xff] %vm59, %v2620
  %2653 = vst.msk [vmem:[%s7 + $0xc0] sm:$0xff] %vm59, %v2621
  %2654 = vst.msk [vmem:[%s7 + $0xc8] sm:$0xff] %vm59, %v2622
  %2655 = vst.msk [vmem:[%s7 + $0xd0] sm:$0xff] %vm59, %v2623
  %2656 = vst.msk [vmem:[%s7 + $0xd8] sm:$0xff] %vm59, %v2624
  %2657 = vst.msk [vmem:[%s7 + $0xe0] sm:$0xff] %vm59, %v2625
  %2658 = vst.msk [vmem:[%s7 + $0xe8] sm:$0xff] %vm59, %v2626
  %2659 = vst.msk [vmem:[%s7 + $0xf0] sm:$0xff] %vm59, %v2627
  %2660 = vst.msk [vmem:[%s7 + $0xf8] sm:$0xff] %vm59, %v2628
  // Predicated region
  $region30: #{tpu_custom_call.1} parent=0 // pred_check
    _
  $region31: #{tpu_custom_call.1} parent=0 // pred_check_branch
    %2662 = sbr.rel (0) target = $region33
  $region32: #{tpu_custom_call.1} parent=0 // pred_region
    _
  $region33: #{tpu_custom_call.1} parent=0 // pred_fallthru
    _
  // Predicated region
  $region34: #{tpu_custom_call.1} parent=0 // pred_check
    _
  $region35: #{tpu_custom_call.1} parent=0 // pred_check_branch
    %2664 = sbr.rel (0) target = $region37
  $region36: #{tpu_custom_call.1} parent=0 // pred_region
    _
  $region37: #{tpu_custom_call.1} parent=0 // pred_fallthru
    _

</llo_original>
